<compile_context>
chip_gen: v7x
topology: tpu7x:2x2x1
jax: 0.10.0
libtpu: 0.0.40
codegen_flags: <defaults>
</compile_context>

<pallas_src>
import functools

import jax
import jax.numpy as jnp
from jax import lax
from jax.experimental import pallas as pl
from jax.experimental.pallas import tpu as pltpu


def _basic_conv_kernel(x_ref, w_ref, shift_ref, o_ref, *,
                       tap_offsets, s_out, apply_relu):
    # x_ref:     (1, Cin, Sp)        flattened padded spatial on lanes
    # w_ref:     (KH*KW, Cout, Cin)  one matrix per conv tap, BN scale pre-folded
    # shift_ref: (Cout, 1)           folded BN shift (+ conv bias)
    # o_ref:     (1, Cout, s_out)    s_out = Hc * Wp (lane-dense)
    x = x_ref[0].astype(jnp.float32)                        # (Cin, Sp)

    acc = None
    for t, off in enumerate(tap_offsets):                   # statically unrolled taps
        w_t = w_ref[t].astype(jnp.float32)                  # (Cout, Cin)
        x_t = x[:, off:off + s_out]                         # (Cin, s_out), constant lane offset
        part = jnp.dot(w_t, x_t, preferred_element_type=jnp.float32)
        acc = part if acc is None else acc + part           # (Cout, s_out) in registers

    y = acc + shift_ref[...].astype(jnp.float32)            # per-channel shift only
    if apply_relu:
        y = jnp.maximum(y, 0.0)
    o_ref[0] = y.astype(o_ref.dtype)


def basic_conv(x, params, *, kernel_size=None, stride=1, padding=0, dilation=1,
               groups=1, relu=True, bn=True, eps=1e-5):
    """x: (N, Cin, H, W) NCHW.  params['weight']: (Cout, Cin, KH, KW) (PyTorch OIHW)."""
    del kernel_size  # taken from the weight shape
    if groups != 1:
        raise NotImplementedError("groups > 1 not implemented")  # TODO(synk)

    w = params["weight"]
    Cout, Cin, KH, KW = w.shape
    N, _, H, W = x.shape
    Hp, Wp = H + 2 * padding, W + 2 * padding
    Hc = Hp - dilation * (KH - 1)        # stride-1 conv output height
    Wc = Wp - dilation * (KW - 1)        # stride-1 conv output width

    # Fold conv bias + eval-mode BN into per-channel (scale, shift); fold scale
    # into the weights so the kernel epilogue is add-only.
    bias = params.get("bias")
    bias = jnp.zeros((Cout,), jnp.float32) if bias is None else bias.astype(jnp.float32)
    if bn:
        scale = params["gamma"].astype(jnp.float32) / jnp.sqrt(
            params["running_var"].astype(jnp.float32) + eps)
        shift = params["beta"].astype(jnp.float32) + \
            (bias - params["running_mean"].astype(jnp.float32)) * scale
    else:
        scale = jnp.ones((Cout,), jnp.float32)
        shift = bias

    # Weights: OIHW -> (taps, Cout, Cin), with BN scale folded in.
    w_taps = jnp.transpose(w, (2, 3, 0, 1)).reshape(KH * KW, Cout, Cin).astype(jnp.float32)
    w_taps = w_taps * scale[None, :, None]
    shift = shift.reshape(Cout, 1)

    # Zero-pad spatially, flatten H,W into one lane axis (no transpose), and add
    # (KW-1)*dilation trailing zeros so every tap slice stays in bounds.
    extra = (KW - 1) * dilation
    x_p = x if padding == 0 else jnp.pad(
        x, ((0, 0), (0, 0), (padding, padding), (padding, padding)))
    x_flat = x_p.reshape(N, Cin, Hp * Wp)
    if extra:
        x_flat = jnp.pad(x_flat, ((0, 0), (0, 0), (0, extra)))
    Sp = Hp * Wp + extra

    # Output computed with padded width Wp on lanes (lane-dense stores); columns
    # >= Wc are garbage and sliced away afterwards, which keeps every tap a
    # constant offset.
    s_out = Hc * Wp
    tap_offsets = tuple(ky * dilation * Wp + kx * dilation
                        for ky in range(KH) for kx in range(KW))

    kernel = functools.partial(_basic_conv_kernel, tap_offsets=tap_offsets,
                               s_out=s_out, apply_relu=relu)

    out_flat = pl.pallas_call(
        kernel,
        out_shape=jax.ShapeDtypeStruct((N, Cout, s_out), x.dtype),
        grid_spec=pltpu.PrefetchScalarGridSpec(
            num_scalar_prefetch=0,
            grid=(N,),
            in_specs=[
                pl.BlockSpec((1, Cin, Sp), lambda n: (n, 0, 0)),          # x
                pl.BlockSpec((KH * KW, Cout, Cin), lambda n: (0, 0, 0)),  # weights
                pl.BlockSpec((Cout, 1), lambda n: (0, 0)),                # shift
            ],
            out_specs=pl.BlockSpec((1, Cout, s_out), lambda n: (n, 0, 0)),
        ),
        compiler_params=pltpu.CompilerParams(
            dimension_semantics=("parallel",)),
    )(x_flat, w_taps, shift)

    out = out_flat.reshape(N, Cout, Hc, Wp)
    # Drop padded-width garbage columns; apply stride by subsampling.
    return out[:, :, ::stride, :Wc:stride]


basic_conv_jit = jax.jit(
    basic_conv,
    static_argnames=("kernel_size", "stride", "padding", "dilation", "groups",
                     "relu", "bn", "eps"))


def basic_conv_reference(x, params, *, stride=1, padding=0, dilation=1,
                         relu=True, bn=True, eps=1e-5):
    """Pure-JAX reference mirroring BasicConv.forward (BN in eval mode)."""
    w = params["weight"]
    y = lax.conv_general_dilated(
        x, w, window_strides=(stride, stride),
        padding=((padding, padding), (padding, padding)),
        rhs_dilation=(dilation, dilation),
        dimension_numbers=("NCHW", "OIHW", "NCHW"))
    if params.get("bias") is not None:
        y = y + params["bias"][None, :, None, None]
    if bn:
        scale = params["gamma"] / jnp.sqrt(params["running_var"] + eps)
        shift = params["beta"] - params["running_mean"] * scale
        y = y * scale[None, :, None, None] + shift[None, :, None, None]
    if relu:
        y = jnp.maximum(y, 0.0)
    return y


if __name__ == "__main__":
    key = jax.random.PRNGKey(0)
    ks = jax.random.split(key, 8)

    N, Cin, Cout, H, W = 2, 4, 8, 16, 16
    x = jax.random.normal(ks[0], (N, Cin, H, W), jnp.float32)
    params = {
        "weight": 0.1 * jax.random.normal(ks[1], (Cout, Cin, 3, 3), jnp.float32),
        "bias": None,  # BasicConv default: bias=False
        "gamma": 1.0 + 0.1 * jax.random.normal(ks[2], (Cout,), jnp.float32),
        "beta": 0.1 * jax.random.normal(ks[3], (Cout,), jnp.float32),
        "running_mean": 0.1 * jax.random.normal(ks[4], (Cout,), jnp.float32),
        "running_var": jnp.abs(1.0 + 0.1 * jax.random.normal(ks[5], (Cout,), jnp.float32)),
    }

    # 1) BasicConv(4, 8, kernel_size=3, stride=1, padding=1) — default bn + relu.
    out = jax.block_until_ready(
        basic_conv_jit(x, params, kernel_size=3, stride=1, padding=1))
    ref = jax.block_until_ready(
        basic_conv_reference(x, params, stride=1, padding=1))
    assert out.shape == (N, Cout, H, W), out.shape
    assert jnp.allclose(out, ref, atol=1e-3, rtol=1e-3), "mismatch (3x3, stride=1)"

    # 2) Same conv with stride=2.
    out2 = jax.block_until_ready(
        basic_conv_jit(x, params, kernel_size=3, stride=2, padding=1))
    ref2 = jax.block_until_ready(
        basic_conv_reference(x, params, stride=2, padding=1))
    assert out2.shape == ref2.shape == (N, Cout, 8, 8), out2.shape
    assert jnp.allclose(out2, ref2, atol=1e-3, rtol=1e-3), "mismatch (3x3, stride=2)"

    # 3) 1x1 conv, bias=True, bn=False, relu=True.
    params1 = {
        "weight": 0.1 * jax.random.normal(ks[6], (Cout, Cin, 1, 1), jnp.float32),
        "bias": 0.1 * jax.random.normal(ks[7], (Cout,), jnp.float32),
    }
    out3 = jax.block_until_ready(
        basic_conv_jit(x, params1, kernel_size=1, bn=False))
    ref3 = jax.block_until_ready(
        basic_conv_reference(x, params1, bn=False))
    assert out3.shape == (N, Cout, H, W), out3.shape
    assert jnp.allclose(out3, ref3, atol=1e-3, rtol=1e-3), "mismatch (1x1, no bn)"

    print("KERNEL_OK")
</pallas_src>

<mosaic_0001>
module attributes {stable_mosaic.version = 11 : i64} {
  func.func @_basic_conv_kernel(%arg0: i32, %arg1: memref<1x4x326xf32, #tpu.memory_space<vmem>>, %arg2: memref<9x8x4xf32, #tpu.memory_space<vmem>>, %arg3: memref<8x1xf32, #tpu.memory_space<vmem>>, %arg4: memref<1x8x288xf32, #tpu.memory_space<vmem>>) attributes {dimension_semantics = [#tpu.dimension_semantics<parallel>], iteration_bounds = array<i64: 2>, scalar_prefetch = 0 : i64, scratch_operands = 0 : i64, tpu.core_type = #tpu.core_type<tc>, window_params = [{transform_indices = @transform_0, window_bounds = array<i64: 1, 4, 326>}, {pipeline_mode = #tpu.pipeline_mode<synchronous>, transform_indices = @transform_1, window_bounds = array<i64: 9, 8, 4>}, {pipeline_mode = #tpu.pipeline_mode<synchronous>, transform_indices = @transform_2, window_bounds = array<i64: 8, 1>}, {transform_indices = @transform_3, window_bounds = array<i64: 1, 8, 288>}]} {
    %c0 = arith.constant 0 : index
    %c0_0 = arith.constant 0 : index
    %c0_1 = arith.constant 0 : index
    %0 = vector.load %arg1[%c0, %c0_0, %c0_1] : memref<1x4x326xf32, #tpu.memory_space<vmem>>, vector<1x4x326xf32>
    %1 = vector.shape_cast %0 : vector<1x4x326xf32> to vector<4x326xf32>
    %c0_2 = arith.constant 0 : index
    %c0_3 = arith.constant 0 : index
    %c0_4 = arith.constant 0 : index
    %2 = vector.load %arg2[%c0_2, %c0_3, %c0_4] : memref<9x8x4xf32, #tpu.memory_space<vmem>>, vector<1x8x4xf32>
    %3 = vector.shape_cast %2 : vector<1x8x4xf32> to vector<8x4xf32>
    %4 = vector.extract_strided_slice %1 {offsets = [0, 0], sizes = [4, 288], strides = [1, 1]} : vector<4x326xf32> to vector<4x288xf32>
    %cst = arith.constant dense<0.000000e+00> : vector<8x288xf32>
    %5 = tpu.matmul %3, %4, %cst {dimension_numbers = #tpu.dot_dimension_numbers<[1], [0], [0], [1], [0, 0, 1, 1], [], []>} : vector<8x4xf32>, vector<4x288xf32>, vector<8x288xf32> -> vector<8x288xf32>
    %c1 = arith.constant 1 : index
    %c0_5 = arith.constant 0 : index
    %c0_6 = arith.constant 0 : index
    %6 = vector.load %arg2[%c1, %c0_5, %c0_6] : memref<9x8x4xf32, #tpu.memory_space<vmem>>, vector<1x8x4xf32>
    %7 = vector.shape_cast %6 : vector<1x8x4xf32> to vector<8x4xf32>
    %8 = vector.extract_strided_slice %1 {offsets = [0, 1], sizes = [4, 288], strides = [1, 1]} : vector<4x326xf32> to vector<4x288xf32>
    %cst_7 = arith.constant dense<0.000000e+00> : vector<8x288xf32>
    %9 = tpu.matmul %7, %8, %cst_7 {dimension_numbers = #tpu.dot_dimension_numbers<[1], [0], [0], [1], [0, 0, 1, 1], [], []>} : vector<8x4xf32>, vector<4x288xf32>, vector<8x288xf32> -> vector<8x288xf32>
    %10 = arith.addf %5, %9 : vector<8x288xf32>
    %c2 = arith.constant 2 : index
    %c0_8 = arith.constant 0 : index
    %c0_9 = arith.constant 0 : index
    %11 = vector.load %arg2[%c2, %c0_8, %c0_9] : memref<9x8x4xf32, #tpu.memory_space<vmem>>, vector<1x8x4xf32>
    %12 = vector.shape_cast %11 : vector<1x8x4xf32> to vector<8x4xf32>
    %13 = vector.extract_strided_slice %1 {offsets = [0, 2], sizes = [4, 288], strides = [1, 1]} : vector<4x326xf32> to vector<4x288xf32>
    %cst_10 = arith.constant dense<0.000000e+00> : vector<8x288xf32>
    %14 = tpu.matmul %12, %13, %cst_10 {dimension_numbers = #tpu.dot_dimension_numbers<[1], [0], [0], [1], [0, 0, 1, 1], [], []>} : vector<8x4xf32>, vector<4x288xf32>, vector<8x288xf32> -> vector<8x288xf32>
    %15 = arith.addf %10, %14 : vector<8x288xf32>
    %c3 = arith.constant 3 : index
    %c0_11 = arith.constant 0 : index
    %c0_12 = arith.constant 0 : index
    %16 = vector.load %arg2[%c3, %c0_11, %c0_12] : memref<9x8x4xf32, #tpu.memory_space<vmem>>, vector<1x8x4xf32>
    %17 = vector.shape_cast %16 : vector<1x8x4xf32> to vector<8x4xf32>
    %18 = vector.extract_strided_slice %1 {offsets = [0, 18], sizes = [4, 288], strides = [1, 1]} : vector<4x326xf32> to vector<4x288xf32>
    %cst_13 = arith.constant dense<0.000000e+00> : vector<8x288xf32>
    %19 = tpu.matmul %17, %18, %cst_13 {dimension_numbers = #tpu.dot_dimension_numbers<[1], [0], [0], [1], [0, 0, 1, 1], [], []>} : vector<8x4xf32>, vector<4x288xf32>, vector<8x288xf32> -> vector<8x288xf32>
    %20 = arith.addf %15, %19 : vector<8x288xf32>
    %c4 = arith.constant 4 : index
    %c0_14 = arith.constant 0 : index
    %c0_15 = arith.constant 0 : index
    %21 = vector.load %arg2[%c4, %c0_14, %c0_15] : memref<9x8x4xf32, #tpu.memory_space<vmem>>, vector<1x8x4xf32>
    %22 = vector.shape_cast %21 : vector<1x8x4xf32> to vector<8x4xf32>
    %23 = vector.extract_strided_slice %1 {offsets = [0, 19], sizes = [4, 288], strides = [1, 1]} : vector<4x326xf32> to vector<4x288xf32>
    %cst_16 = arith.constant dense<0.000000e+00> : vector<8x288xf32>
    %24 = tpu.matmul %22, %23, %cst_16 {dimension_numbers = #tpu.dot_dimension_numbers<[1], [0], [0], [1], [0, 0, 1, 1], [], []>} : vector<8x4xf32>, vector<4x288xf32>, vector<8x288xf32> -> vector<8x288xf32>
    %25 = arith.addf %20, %24 : vector<8x288xf32>
    %c5 = arith.constant 5 : index
    %c0_17 = arith.constant 0 : index
    %c0_18 = arith.constant 0 : index
    %26 = vector.load %arg2[%c5, %c0_17, %c0_18] : memref<9x8x4xf32, #tpu.memory_space<vmem>>, vector<1x8x4xf32>
    %27 = vector.shape_cast %26 : vector<1x8x4xf32> to vector<8x4xf32>
    %28 = vector.extract_strided_slice %1 {offsets = [0, 20], sizes = [4, 288], strides = [1, 1]} : vector<4x326xf32> to vector<4x288xf32>
    %cst_19 = arith.constant dense<0.000000e+00> : vector<8x288xf32>
    %29 = tpu.matmul %27, %28, %cst_19 {dimension_numbers = #tpu.dot_dimension_numbers<[1], [0], [0], [1], [0, 0, 1, 1], [], []>} : vector<8x4xf32>, vector<4x288xf32>, vector<8x288xf32> -> vector<8x288xf32>
    %30 = arith.addf %25, %29 : vector<8x288xf32>
    %c6 = arith.constant 6 : index
    %c0_20 = arith.constant 0 : index
    %c0_21 = arith.constant 0 : index
    %31 = vector.load %arg2[%c6, %c0_20, %c0_21] : memref<9x8x4xf32, #tpu.memory_space<vmem>>, vector<1x8x4xf32>
    %32 = vector.shape_cast %31 : vector<1x8x4xf32> to vector<8x4xf32>
    %33 = vector.extract_strided_slice %1 {offsets = [0, 36], sizes = [4, 288], strides = [1, 1]} : vector<4x326xf32> to vector<4x288xf32>
    %cst_22 = arith.constant dense<0.000000e+00> : vector<8x288xf32>
    %34 = tpu.matmul %32, %33, %cst_22 {dimension_numbers = #tpu.dot_dimension_numbers<[1], [0], [0], [1], [0, 0, 1, 1], [], []>} : vector<8x4xf32>, vector<4x288xf32>, vector<8x288xf32> -> vector<8x288xf32>
    %35 = arith.addf %30, %34 : vector<8x288xf32>
    %c7 = arith.constant 7 : index
    %c0_23 = arith.constant 0 : index
    %c0_24 = arith.constant 0 : index
    %36 = vector.load %arg2[%c7, %c0_23, %c0_24] : memref<9x8x4xf32, #tpu.memory_space<vmem>>, vector<1x8x4xf32>
    %37 = vector.shape_cast %36 : vector<1x8x4xf32> to vector<8x4xf32>
    %38 = vector.extract_strided_slice %1 {offsets = [0, 37], sizes = [4, 288], strides = [1, 1]} : vector<4x326xf32> to vector<4x288xf32>
    %cst_25 = arith.constant dense<0.000000e+00> : vector<8x288xf32>
    %39 = tpu.matmul %37, %38, %cst_25 {dimension_numbers = #tpu.dot_dimension_numbers<[1], [0], [0], [1], [0, 0, 1, 1], [], []>} : vector<8x4xf32>, vector<4x288xf32>, vector<8x288xf32> -> vector<8x288xf32>
    %40 = arith.addf %35, %39 : vector<8x288xf32>
    %c8 = arith.constant 8 : index
    %c0_26 = arith.constant 0 : index
    %c0_27 = arith.constant 0 : index
    %41 = vector.load %arg2[%c8, %c0_26, %c0_27] : memref<9x8x4xf32, #tpu.memory_space<vmem>>, vector<1x8x4xf32>
    %42 = vector.shape_cast %41 : vector<1x8x4xf32> to vector<8x4xf32>
    %43 = vector.extract_strided_slice %1 {offsets = [0, 38], sizes = [4, 288], strides = [1, 1]} : vector<4x326xf32> to vector<4x288xf32>
    %cst_28 = arith.constant dense<0.000000e+00> : vector<8x288xf32>
    %44 = tpu.matmul %42, %43, %cst_28 {dimension_numbers = #tpu.dot_dimension_numbers<[1], [0], [0], [1], [0, 0, 1, 1], [], []>} : vector<8x4xf32>, vector<4x288xf32>, vector<8x288xf32> -> vector<8x288xf32>
    %45 = arith.addf %40, %44 : vector<8x288xf32>
    %c0_29 = arith.constant 0 : index
    %c0_30 = arith.constant 0 : index
    %46 = vector.load %arg3[%c0_29, %c0_30] : memref<8x1xf32, #tpu.memory_space<vmem>>, vector<8x1xf32>
    %47 = vector.broadcast %46 : vector<8x1xf32> to vector<8x288xf32>
    %48 = arith.addf %45, %47 : vector<8x288xf32>
    %cst_31 = arith.constant 0.000000e+00 : f32
    %49 = vector.broadcast %cst_31 : f32 to vector<8x288xf32>
    %50 = arith.maximumf %48, %49 : vector<8x288xf32>
    %c0_32 = arith.constant 0 : index
    %c0_33 = arith.constant 0 : index
    %c0_34 = arith.constant 0 : index
    %51 = vector.load %arg4[%c0_32, %c0_33, %c0_34] : memref<1x8x288xf32, #tpu.memory_space<vmem>>, vector<1x8x288xf32>
    %52 = vector.shape_cast %51 : vector<1x8x288xf32> to vector<8x288xf32>
    %53 = vector.shape_cast %50 : vector<8x288xf32> to vector<1x8x288xf32>
    tpu.vector_store %arg4[%c0_32, %c0_33, %c0_34], %53 {strides = array<i32>} : memref<1x8x288xf32, #tpu.memory_space<vmem>>, vector<1x8x288xf32>,
    return
  }
  func.func @transform_0(%arg0: i32) -> (i32, i32, i32) {
    %c0_i32 = arith.constant 0 : i32
    %c0_i32_0 = arith.constant 0 : i32
    %c0_i32_1 = arith.constant 0 : i32
    return %arg0, %c0_i32, %c0_i32_0 : i32, i32, i32
  }
  func.func @transform_1(%arg0: i32) -> (i32, i32, i32) {
    %c0_i32 = arith.constant 0 : i32
    %c0_i32_0 = arith.constant 0 : i32
    %c0_i32_1 = arith.constant 0 : i32
    %c0_i32_2 = arith.constant 0 : i32
    return %c0_i32, %c0_i32_0, %c0_i32_1 : i32, i32, i32
  }
  func.func @transform_2(%arg0: i32) -> (i32, i32) {
    %c0_i32 = arith.constant 0 : i32
    %c0_i32_0 = arith.constant 0 : i32
    %c0_i32_1 = arith.constant 0 : i32
    return %c0_i32, %c0_i32_0 : i32, i32
  }
  func.func @transform_3(%arg0: i32) -> (i32, i32, i32) {
    %c0_i32 = arith.constant 0 : i32
    %c0_i32_0 = arith.constant 0 : i32
    %c0_i32_1 = arith.constant 0 : i32
    return %arg0, %c0_i32, %c0_i32_0 : i32, i32, i32
  }
}

</mosaic_0001>

<llo_original>
// kernel: basic_conv.1
$region0: #{basic_conv.1}
  #allocation0 [shape = 'u32[]', space=smem, size = 0x4, offset = 0x4, fixed_abs, tag = 'smem constant byte address 0x4 - core index']
  #allocation1 [shape = 'u32[144,128]{1,0:T(1,128)}', space=vmem, size = 0x12000, scoped, tag = 'internal scratch']
  %s0 = inlined_call_operand.vmem [shape: f32[2,4,326], index: 0, kind: input, shape index: {}]
  %s1 = inlined_call_operand.vmem [shape: f32[9,8,4], index: 1, kind: input, shape index: {}]
  %s2 = inlined_call_operand.vmem [shape: f32[8,1], index: 2, kind: input, shape index: {}]
  %s3 = inlined_call_operand.vmem [shape: f32[2,8,288], index: 3, kind: output, shape index: {}]
  %s4 = sld [smem:[#allocation0]]
  $region45: #{basic_conv.1} parent=0
    _
  %s6 = ssub.s32 1, %s4
  %s7 = scalar_select 0, %s6, %s4
  loop: start=0, step=1, limit=4
  $region2: #{basic_conv.1} parent=0 // loop_pre_header
    _
  $region3: #{basic_conv.1} parent=0 // loop_header
    %s9 = sphi 0, %s13
    %p10 = scmp.ge.s32.totalorder %s9, 4
    %s19 = sphi 0, %s21
    %s22 = sphi 0, %s19
    %s23 = sphi 0, %s22
    %s39 = sphi 0, %s23
    %s43 = sphi 0, %s43
    %s45 = sphi 0, %s43
    %s46 = sphi 0, %s45
    %s60 = sphi 0, %s46
    %s64 = sphi 0, %s64
    %s66 = sphi 0, %s64
    %s67 = sphi 0, %s66
    %s81 = sphi 0, %s67
    %s87 = sphi 0, %s89
    %s90 = sphi 0, %s87
    %s91 = sphi 0, %s90
    %s107 = sphi 0, %s91
  $region4: #{basic_conv.1} parent=0 // loop_header_branch
    %12 = sbr.rel (%p10) target = $region8
  $region5: #{basic_conv.1} parent=0 // loop_body
    %s14 = ssub.s32 %s9, 1
    %s15 = ssub.s32 %s9, 2
    %s16 = sadd.s32 %s9, 1
    %s17 = ssub.s32 %s9, %s16
    %p18 = scmp.eq.s32.totalorder %s17, 0
    %s20 = sadd.s32 %s19, 1
    %s21 = scalar_select %p18, %s19, %s20
    %p24 = pneg %p18
    %p25 = scmp.eq.s32.totalorder %s9, 1
    %p26 = por %p24, %p25
    %p27 = scmp.ne.s32.totalorder %s19, %s22
    %p28 = scmp.eq.s32.totalorder %s9, 0
    %p29 = por %p27, %p28
    %p30 = scmp.ne.s32.totalorder %s19, %s22
    %p31 = scmp.eq.s32.totalorder %s14, 1
    %p32 = por %p30, %p31
    %p33 = scmp.ne.s32.totalorder %s22, %s23
    %p34 = scmp.eq.s32.totalorder %s14, 0
    %p35 = por %p33, %p34
    %p36 = scmp.ne.s32.totalorder %s22, %s23
    %p37 = scmp.eq.s32.totalorder %s15, 1
    %p38 = por %p36, %p37
    %p40 = scmp.ne.s32.totalorder %s23, %s39
    %p41 = scmp.eq.s32.totalorder %s15, 0
    %p42 = por %p40, %p41
    %s44 = sadd.s32 %s43, 1
    %p47 = scmp.eq.s32.totalorder %s9, 1
    %p48 = scmp.ne.s32.totalorder %s43, %s45
    %p49 = scmp.eq.s32.totalorder %s9, 0
    %p50 = por %p48, %p49
    %p51 = scmp.ne.s32.totalorder %s43, %s45
    %p52 = scmp.eq.s32.totalorder %s14, 1
    %p53 = por %p51, %p52
    %p54 = scmp.ne.s32.totalorder %s45, %s46
    %p55 = scmp.eq.s32.totalorder %s14, 0
    %p56 = por %p54, %p55
    %p57 = scmp.ne.s32.totalorder %s45, %s46
    %p58 = scmp.eq.s32.totalorder %s15, 1
    %p59 = por %p57, %p58
    %p61 = scmp.ne.s32.totalorder %s46, %s60
    %p62 = scmp.eq.s32.totalorder %s15, 0
    %p63 = por %p61, %p62
    %s65 = sadd.s32 %s64, 1
    %p68 = scmp.eq.s32.totalorder %s9, 1
    %p69 = scmp.ne.s32.totalorder %s64, %s66
    %p70 = scmp.eq.s32.totalorder %s9, 0
    %p71 = por %p69, %p70
    %p72 = scmp.ne.s32.totalorder %s64, %s66
    %p73 = scmp.eq.s32.totalorder %s14, 1
    %p74 = por %p72, %p73
    %p75 = scmp.ne.s32.totalorder %s66, %s67
    %p76 = scmp.eq.s32.totalorder %s14, 0
    %p77 = por %p75, %p76
    %p78 = scmp.ne.s32.totalorder %s66, %s67
    %p79 = scmp.eq.s32.totalorder %s15, 1
    %p80 = por %p78, %p79
    %p82 = scmp.ne.s32.totalorder %s67, %s81
    %p83 = scmp.eq.s32.totalorder %s15, 0
    %p84 = por %p82, %p83
    %s85 = ssub.s32 %s9, %s16
    %p86 = scmp.eq.s32.totalorder %s85, 0
    %s88 = sadd.s32 %s87, 1
    %s89 = scalar_select %p86, %s87, %s88
    %p92 = pneg %p86
    %p93 = scmp.eq.s32.totalorder %s9, 1
    %p94 = por %p92, %p93
    %p95 = scmp.ne.s32.totalorder %s87, %s90
    %p96 = scmp.eq.s32.totalorder %s9, 0
    %p97 = por %p95, %p96
    %p98 = scmp.ne.s32.totalorder %s87, %s90
    %p99 = scmp.eq.s32.totalorder %s14, 1
    %p100 = por %p98, %p99
    %p101 = scmp.ne.s32.totalorder %s90, %s91
    %p102 = scmp.eq.s32.totalorder %s14, 0
    %p103 = por %p101, %p102
    %p104 = scmp.ne.s32.totalorder %s90, %s91
    %p105 = scmp.eq.s32.totalorder %s15, 1
    %p106 = por %p104, %p105
    %p108 = scmp.ne.s32.totalorder %s91, %s107
    %p109 = scmp.eq.s32.totalorder %s15, 0
    %p110 = por %p108, %p109
    %p111 = scmp.le.s32.totalorder 1, %s9
    %p112 = scmp.lt.s32.totalorder %s9, 3
    %p113 = pnand %p111, %p112
    %p114 = pneg %p113
    // Predicated region
    $region9: #{basic_conv.1} parent=5 // pred_check
      _
    $region10: #{basic_conv.1} parent=5 // pred_check_branch
      %116 = sbr.rel (%p113) target = $region12
    $region11: #{basic_conv.1} parent=5 // pred_region
      %s117 = ssub.s32 %s9, 1
      // Predicated region
      $region13: #{basic_conv.1} parent=11 // pred_check
        %p118 = pneg %p56
      $region14: #{basic_conv.1} parent=11 // pred_check_branch
        %120 = sbr.rel (%p118) target = $region16
      $region15: #{basic_conv.1} parent=11 // pred_region
        _
      $region16: #{basic_conv.1} parent=11 // pred_fallthru
        _
      // Predicated region
      $region17: #{basic_conv.1} parent=11 // pred_check
        %p121 = pneg %p77
      $region18: #{basic_conv.1} parent=11 // pred_check_branch
        %123 = sbr.rel (%p121) target = $region20
      $region19: #{basic_conv.1} parent=11 // pred_region
        _
      $region20: #{basic_conv.1} parent=11 // pred_fallthru
        _
    $region12: #{basic_conv.1} parent=5 // pred_fallthru
      _
    %p124 = scmp.lt.s32.totalorder %s9, 2
    // Predicated region
    $region21: #{basic_conv.1} parent=5 // pred_check
      %p125 = pneg %p124
    $region22: #{basic_conv.1} parent=5 // pred_check_branch
      %127 = sbr.rel (%p125) target = $region24
    $region23: #{basic_conv.1} parent=5 // pred_region
      // Predicated region
      $region25: #{basic_conv.1} parent=23 // pred_check
        %p128 = pneg %p29
      $region26: #{basic_conv.1} parent=23 // pred_check_branch
        %130 = sbr.rel (%p128) target = $region28
      $region27: #{basic_conv.1} parent=23 // pred_region
        %p131 = scmp.lt.s32.totalorder %s9, 1
        %s132 = scalar_select %p131, %s9, 1
        %s133 = smul.addr %s132, 3
        %s134 = smul.addr %s133, 4
        %s135 = scalar_lea.vmem %s0, %s134
      $region28: #{basic_conv.1} parent=23 // pred_fallthru
        _
    $region24: #{basic_conv.1} parent=5 // pred_fallthru
      _
    %p136 = scmp.le.s32.totalorder 1, %s9
    %p137 = scmp.lt.s32.totalorder %s9, 3
    %p138 = pnand %p136, %p137
    %p139 = pneg %p138
    // Predicated region
    $region29: #{basic_conv.1} parent=5 // pred_check
      _
    $region30: #{basic_conv.1} parent=5 // pred_check_branch
      %141 = sbr.rel (%p138) target = $region32
    $region31: #{basic_conv.1} parent=5 // pred_region
      %s142 = ssub.s32 %s9, 1
      %p143 = scmp.lt.s32.totalorder %s14, 1
      %s144 = scalar_select %p143, %s14, 1
      %s145 = smul.addr %s144, 3
      %s146 = smul.addr %s145, 4
      %s147 = scalar_lea.vmem %s0, %s146
      %p148 = pneg %p35
      %p149 = pneg %p32
      %p150 = pneg %p56
      %p151 = pneg %p53
      %p152 = pneg %p77
      %p153 = pneg %p74
      %p154 = pneg %p103
      %p155 = pneg %p100
      %p156 = scmp.lt.s32.totalorder %s14, 1
      %s157 = scalar_select %p156, %s14, 1
      %s158 = smul.addr %s157, 3
      %s159 = smul.addr %s158, 8
      %s160 = scalar_lea.vmem %s3, %s159
      %p161 = scmp.lt.s32.totalorder %s14, 1
      %s162 = scalar_select %p161, %s14, 1
      %s163 = smul.addr %s162, 3
      %s164 = smul.addr %s163, 4
      %s165 = scalar_lea.vmem %s0, %s164
      %p166 = scmp.lt.s32.totalorder %s14, 1
      %s167 = scalar_select %p166, %s14, 1
      %s168 = smul.addr %s167, 3
      %s169 = smul.addr %s168, 8
      %s170 = scalar_lea.vmem %s3, %s169
      %v171 = vld [vmem:[%s165] sm:$0xff]
      %v172 = vld [vmem:[%s165 + $0x8] sm:$0xf]
      %v173 = vld [vmem:[%s1] sm:$0xff]
      %s174 = scalar_lea.vmem %s1, 8
      %v175 = vld [vmem:[%s174] sm:$0xff]
      %v178 = vcombine.high %v171, %v171
      %179 = vrot.lane.b32.xlu0 %v171, 127
      %v180 = vpop.permute.xlu0 %179
      %181 = vrot.lane.b32.xlu0 %v178, 127
      %v182 = vpop.permute.xlu0 %181
      %183 = vrot.lane.b32.xlu0 %v172, 127
      %v184 = vpop.permute.xlu0 %183
      %vm185 = vcmask 1039360
      %v186 = vsel %vm185, %v180, %v182
      %v187 = vsel %vm185, %v182, %v184
      %vm188 = vcmask 31744
      %v190 = vsel %vm188, %v175, 0
      %vm192 = vcmask 1043456
      %v193 = vsel %vm192, %v186, 0
      %v195 = vsel %vm192, %v187, 0
      %v197 = vsel %vm192, %v184, 0
      %199 = vmatprep.subr.mxu0 %v195
      %200 = vmatpush1.msra.mxu0 %v193
      %201 = vmatprep.subr.mxu0 0.0
      %202 = vmatpush1.msra.mxu0 0.0
      %203 = vmatprep.subr.mxu0 0.0
      %204 = vmatpush1.msra.mxu0 0.0
      %205 = vmatprep.subr.mxu0 0.0
      %206 = vmatpush1.msra.mxu0 0.0
      %207 = vmatprep.subr.mxu0 0.0
      %208 = vmatpush1.msra.mxu0 0.0
      %209 = vmatprep.subr.mxu0 0.0
      %210 = vmatpush1.msra.mxu0 0.0
      %211 = vmatprep.subr.mxu0 0.0
      %212 = vmatpush1.msra.mxu0 0.0
      %213 = vmatprep.subr.mxu0 0.0
      %214 = vmatpush1.msra.mxu0 0.0
      %215 = vmatprep.subr.mxu0 0.0
      %216 = vmatpush1.msra.mxu0 0.0
      %217 = vmatprep.subr.mxu0 0.0
      %218 = vmatpush1.msra.mxu0 0.0
      %219 = vmatprep.subr.mxu0 0.0
      %220 = vmatpush1.msra.mxu0 0.0
      %221 = vmatprep.subr.mxu0 0.0
      %222 = vmatpush1.msra.mxu0 0.0
      %223 = vmatprep.subr.mxu0 0.0
      %224 = vmatpush1.msra.mxu0 0.0
      %225 = vmatprep.subr.mxu0 0.0
      %226 = vmatpush1.msra.mxu0 0.0
      %227 = vmatprep.subr.mxu0 0.0
      %228 = vmatpush1.msra.mxu0 0.0
      %229 = vmatprep.subr.mxu0 0.0
      %230 = vmatpush1.msra.mxu0 0.0
      %231 = vmatprep.subr.mxu0 0.0
      %232 = vmatpush1.msra.mxu0 0.0
      %233 = vmatprep.subr.mxu0 0.0
      %234 = vmatpush1.msra.mxu0 0.0
      %235 = vmatprep.subr.mxu0 0.0
      %236 = vmatpush1.msra.mxu0 0.0
      %237 = vmatprep.subr.mxu0 0.0
      %238 = vmatpush1.msra.mxu0 0.0
      %239 = vmatprep.subr.mxu0 0.0
      %240 = vmatpush1.msra.mxu0 0.0
      %241 = vmatprep.subr.mxu0 0.0
      %242 = vmatpush1.msra.mxu0 0.0
      %243 = vmatprep.subr.mxu0 0.0
      %244 = vmatpush1.msra.mxu0 0.0
      %245 = vmatprep.subr.mxu0 0.0
      %246 = vmatpush1.msra.mxu0 0.0
      %247 = vmatprep.subr.mxu0 0.0
      %248 = vmatpush1.msra.mxu0 0.0
      %249 = vmatprep.subr.mxu0 0.0
      %250 = vmatpush1.msra.mxu0 0.0
      %251 = vmatprep.subr.mxu0 0.0
      %252 = vmatpush1.msra.mxu0 0.0
      %253 = vmatprep.subr.mxu0 0.0
      %254 = vmatpush1.msra.mxu0 0.0
      %255 = vmatprep.subr.mxu0 0.0
      %256 = vmatpush1.msra.mxu0 0.0
      %257 = vmatprep.subr.mxu0 0.0
      %258 = vmatpush1.msra.mxu0 0.0
      %259 = vmatprep.subr.mxu0 0.0
      %260 = vmatpush1.msra.mxu0 0.0
      %261 = vmatprep.subr.mxu0 0.0
      %262 = vmatpush1.msra.mxu0 0.0
      %263 = vmatprep.mubr.f32.mxu0 0.0
      %264 = vmatmul.mubr.f32.gmra.mrb[0].mxu0 %v190
      %v265 = vpop.f32.mrb[0].mxu0
      %v266 = vadd.f32 0.0, %v265
      %v267 = vpop.f32.mrb[0].mxu0
      %v268 = vadd.f32 0.0, %v267
      %269 = vdwg.mxu0
      %270 = vmatprep.subr.mxu0 0.0
      %271 = vmatpush1.msra.mxu0 %v197
      %272 = vmatprep.subr.mxu0 0.0
      %273 = vmatpush1.msra.mxu0 0.0
      %274 = vmatprep.subr.mxu0 0.0
      %275 = vmatpush1.msra.mxu0 0.0
      %276 = vmatprep.subr.mxu0 0.0
      %277 = vmatpush1.msra.mxu0 0.0
      %278 = vmatprep.subr.mxu0 0.0
      %279 = vmatpush1.msra.mxu0 0.0
      %280 = vmatprep.subr.mxu0 0.0
      %281 = vmatpush1.msra.mxu0 0.0
      %282 = vmatprep.subr.mxu0 0.0
      %283 = vmatpush1.msra.mxu0 0.0
      %284 = vmatprep.subr.mxu0 0.0
      %285 = vmatpush1.msra.mxu0 0.0
      %286 = vmatprep.subr.mxu0 0.0
      %287 = vmatpush1.msra.mxu0 0.0
      %288 = vmatprep.subr.mxu0 0.0
      %289 = vmatpush1.msra.mxu0 0.0
      %290 = vmatprep.subr.mxu0 0.0
      %291 = vmatpush1.msra.mxu0 0.0
      %292 = vmatprep.subr.mxu0 0.0
      %293 = vmatpush1.msra.mxu0 0.0
      %294 = vmatprep.subr.mxu0 0.0
      %295 = vmatpush1.msra.mxu0 0.0
      %296 = vmatprep.subr.mxu0 0.0
      %297 = vmatpush1.msra.mxu0 0.0
      %298 = vmatprep.subr.mxu0 0.0
      %299 = vmatpush1.msra.mxu0 0.0
      %300 = vmatprep.subr.mxu0 0.0
      %301 = vmatpush1.msra.mxu0 0.0
      %302 = vmatprep.subr.mxu0 0.0
      %303 = vmatpush1.msra.mxu0 0.0
      %304 = vmatprep.subr.mxu0 0.0
      %305 = vmatpush1.msra.mxu0 0.0
      %306 = vmatprep.subr.mxu0 0.0
      %307 = vmatpush1.msra.mxu0 0.0
      %308 = vmatprep.subr.mxu0 0.0
      %309 = vmatpush1.msra.mxu0 0.0
      %310 = vmatprep.subr.mxu0 0.0
      %311 = vmatpush1.msra.mxu0 0.0
      %312 = vmatprep.subr.mxu0 0.0
      %313 = vmatpush1.msra.mxu0 0.0
      %314 = vmatprep.subr.mxu0 0.0
      %315 = vmatpush1.msra.mxu0 0.0
      %316 = vmatprep.subr.mxu0 0.0
      %317 = vmatpush1.msra.mxu0 0.0
      %318 = vmatprep.subr.mxu0 0.0
      %319 = vmatpush1.msra.mxu0 0.0
      %320 = vmatprep.subr.mxu0 0.0
      %321 = vmatpush1.msra.mxu0 0.0
      %322 = vmatprep.subr.mxu0 0.0
      %323 = vmatpush1.msra.mxu0 0.0
      %324 = vmatprep.subr.mxu0 0.0
      %325 = vmatpush1.msra.mxu0 0.0
      %326 = vmatprep.subr.mxu0 0.0
      %327 = vmatpush1.msra.mxu0 0.0
      %328 = vmatprep.subr.mxu0 0.0
      %329 = vmatpush1.msra.mxu0 0.0
      %330 = vmatprep.subr.mxu0 0.0
      %331 = vmatpush1.msra.mxu0 0.0
      %332 = vmatprep.subr.mxu0 0.0
      %333 = vmatpush1.msra.mxu0 0.0
      %334 = vmatprep.mubr.f32.mxu0 0.0
      %335 = vmatmul.mubr.f32.gmra.mrb[0].mxu0 %v190
      %v336 = vpop.f32.mrb[0].mxu0
      %v337 = vadd.f32 0.0, %v336
      %v338 = vpop.f32.mrb[0].mxu0
      %339 = vdwg.mxu0
      %v341 = vsel %vm188, %v173, 0
      %v343 = vsel %vm192, %v171, 0
      %v345 = vsel %vm192, %v178, 0
      %v347 = vsel %vm192, %v172, 0
      %349 = vmatprep.subr.mxu0 %v345
      %350 = vmatpush1.msra.mxu0 %v343
      %351 = vmatprep.subr.mxu0 0.0
      %352 = vmatpush1.msra.mxu0 0.0
      %353 = vmatprep.subr.mxu0 0.0
      %354 = vmatpush1.msra.mxu0 0.0
      %355 = vmatprep.subr.mxu0 0.0
      %356 = vmatpush1.msra.mxu0 0.0
      %357 = vmatprep.subr.mxu0 0.0
      %358 = vmatpush1.msra.mxu0 0.0
      %359 = vmatprep.subr.mxu0 0.0
      %360 = vmatpush1.msra.mxu0 0.0
      %361 = vmatprep.subr.mxu0 0.0
      %362 = vmatpush1.msra.mxu0 0.0
      %363 = vmatprep.subr.mxu0 0.0
      %364 = vmatpush1.msra.mxu0 0.0
      %365 = vmatprep.subr.mxu0 0.0
      %366 = vmatpush1.msra.mxu0 0.0
      %367 = vmatprep.subr.mxu0 0.0
      %368 = vmatpush1.msra.mxu0 0.0
      %369 = vmatprep.subr.mxu0 0.0
      %370 = vmatpush1.msra.mxu0 0.0
      %371 = vmatprep.subr.mxu0 0.0
      %372 = vmatpush1.msra.mxu0 0.0
      %373 = vmatprep.subr.mxu0 0.0
      %374 = vmatpush1.msra.mxu0 0.0
      %375 = vmatprep.subr.mxu0 0.0
      %376 = vmatpush1.msra.mxu0 0.0
      %377 = vmatprep.subr.mxu0 0.0
      %378 = vmatpush1.msra.mxu0 0.0
      %379 = vmatprep.subr.mxu0 0.0
      %380 = vmatpush1.msra.mxu0 0.0
      %381 = vmatprep.subr.mxu0 0.0
      %382 = vmatpush1.msra.mxu0 0.0
      %383 = vmatprep.subr.mxu0 0.0
      %384 = vmatpush1.msra.mxu0 0.0
      %385 = vmatprep.subr.mxu0 0.0
      %386 = vmatpush1.msra.mxu0 0.0
      %387 = vmatprep.subr.mxu0 0.0
      %388 = vmatpush1.msra.mxu0 0.0
      %389 = vmatprep.subr.mxu0 0.0
      %390 = vmatpush1.msra.mxu0 0.0
      %391 = vmatprep.subr.mxu0 0.0
      %392 = vmatpush1.msra.mxu0 0.0
      %393 = vmatprep.subr.mxu0 0.0
      %394 = vmatpush1.msra.mxu0 0.0
      %395 = vmatprep.subr.mxu0 0.0
      %396 = vmatpush1.msra.mxu0 0.0
      %397 = vmatprep.subr.mxu0 0.0
      %398 = vmatpush1.msra.mxu0 0.0
      %399 = vmatprep.subr.mxu0 0.0
      %400 = vmatpush1.msra.mxu0 0.0
      %401 = vmatprep.subr.mxu0 0.0
      %402 = vmatpush1.msra.mxu0 0.0
      %403 = vmatprep.subr.mxu0 0.0
      %404 = vmatpush1.msra.mxu0 0.0
      %405 = vmatprep.subr.mxu0 0.0
      %406 = vmatpush1.msra.mxu0 0.0
      %407 = vmatprep.subr.mxu0 0.0
      %408 = vmatpush1.msra.mxu0 0.0
      %409 = vmatprep.subr.mxu0 0.0
      %410 = vmatpush1.msra.mxu0 0.0
      %411 = vmatprep.subr.mxu0 0.0
      %412 = vmatpush1.msra.mxu0 0.0
      %413 = vmatprep.mubr.f32.mxu0 0.0
      %414 = vmatmul.mubr.f32.gmra.mrb[0].mxu0 %v341
      %v415 = vpop.f32.mrb[0].mxu0
      %v416 = vadd.f32 %v266, %v415
      %v417 = vpop.f32.mrb[0].mxu0
      %v418 = vadd.f32 %v268, %v417
      %419 = vdwg.mxu0
      %420 = vmatprep.subr.mxu0 0.0
      %421 = vmatpush1.msra.mxu0 %v347
      %422 = vmatprep.subr.mxu0 0.0
      %423 = vmatpush1.msra.mxu0 0.0
      %424 = vmatprep.subr.mxu0 0.0
      %425 = vmatpush1.msra.mxu0 0.0
      %426 = vmatprep.subr.mxu0 0.0
      %427 = vmatpush1.msra.mxu0 0.0
      %428 = vmatprep.subr.mxu0 0.0
      %429 = vmatpush1.msra.mxu0 0.0
      %430 = vmatprep.subr.mxu0 0.0
      %431 = vmatpush1.msra.mxu0 0.0
      %432 = vmatprep.subr.mxu0 0.0
      %433 = vmatpush1.msra.mxu0 0.0
      %434 = vmatprep.subr.mxu0 0.0
      %435 = vmatpush1.msra.mxu0 0.0
      %436 = vmatprep.subr.mxu0 0.0
      %437 = vmatpush1.msra.mxu0 0.0
      %438 = vmatprep.subr.mxu0 0.0
      %439 = vmatpush1.msra.mxu0 0.0
      %440 = vmatprep.subr.mxu0 0.0
      %441 = vmatpush1.msra.mxu0 0.0
      %442 = vmatprep.subr.mxu0 0.0
      %443 = vmatpush1.msra.mxu0 0.0
      %444 = vmatprep.subr.mxu0 0.0
      %445 = vmatpush1.msra.mxu0 0.0
      %446 = vmatprep.subr.mxu0 0.0
      %447 = vmatpush1.msra.mxu0 0.0
      %448 = vmatprep.subr.mxu0 0.0
      %449 = vmatpush1.msra.mxu0 0.0
      %450 = vmatprep.subr.mxu0 0.0
      %451 = vmatpush1.msra.mxu0 0.0
      %452 = vmatprep.subr.mxu0 0.0
      %453 = vmatpush1.msra.mxu0 0.0
      %454 = vmatprep.subr.mxu0 0.0
      %455 = vmatpush1.msra.mxu0 0.0
      %456 = vmatprep.subr.mxu0 0.0
      %457 = vmatpush1.msra.mxu0 0.0
      %458 = vmatprep.subr.mxu0 0.0
      %459 = vmatpush1.msra.mxu0 0.0
      %460 = vmatprep.subr.mxu0 0.0
      %461 = vmatpush1.msra.mxu0 0.0
      %462 = vmatprep.subr.mxu0 0.0
      %463 = vmatpush1.msra.mxu0 0.0
      %464 = vmatprep.subr.mxu0 0.0
      %465 = vmatpush1.msra.mxu0 0.0
      %466 = vmatprep.subr.mxu0 0.0
      %467 = vmatpush1.msra.mxu0 0.0
      %468 = vmatprep.subr.mxu0 0.0
      %469 = vmatpush1.msra.mxu0 0.0
      %470 = vmatprep.subr.mxu0 0.0
      %471 = vmatpush1.msra.mxu0 0.0
      %472 = vmatprep.subr.mxu0 0.0
      %473 = vmatpush1.msra.mxu0 0.0
      %474 = vmatprep.subr.mxu0 0.0
      %475 = vmatpush1.msra.mxu0 0.0
      %476 = vmatprep.subr.mxu0 0.0
      %477 = vmatpush1.msra.mxu0 0.0
      %478 = vmatprep.subr.mxu0 0.0
      %479 = vmatpush1.msra.mxu0 0.0
      %480 = vmatprep.subr.mxu0 0.0
      %481 = vmatpush1.msra.mxu0 0.0
      %482 = vmatprep.subr.mxu0 0.0
      %483 = vmatpush1.msra.mxu0 0.0
      %484 = vmatprep.mubr.f32.mxu0 0.0
      %485 = vmatmul.mubr.f32.gmra.mrb[0].mxu0 %v341
      %v486 = vpop.f32.mrb[0].mxu0
      %v487 = vadd.f32 %v337, %v486
      %v488 = vpop.f32.mrb[0].mxu0
      %489 = vdwg.mxu0
      %s490 = scalar_lea.vmem %s1, 16
      %v491 = vld [vmem:[%s490] sm:$0xff]
      %492 = vrot.lane.b32.xlu0 %v171, 126
      %v493 = vpop.permute.xlu0 %492
      %494 = vrot.lane.b32.xlu0 %v178, 126
      %v495 = vpop.permute.xlu0 %494
      %496 = vrot.lane.b32.xlu0 %v172, 126
      %v497 = vpop.permute.xlu0 %496
      %vm498 = vcmask 1031168
      %v499 = vsel %vm498, %v493, %v495
      %v500 = vsel %vm498, %v495, %v497
      %v502 = vsel %vm188, %v491, 0
      %v504 = vsel %vm192, %v499, 0
      %v506 = vsel %vm192, %v500, 0
      %v508 = vsel %vm192, %v497, 0
      %510 = vmatprep.subr.mxu0 %v506
      %511 = vmatpush1.msra.mxu0 %v504
      %512 = vmatprep.subr.mxu0 0.0
      %513 = vmatpush1.msra.mxu0 0.0
      %514 = vmatprep.subr.mxu0 0.0
      %515 = vmatpush1.msra.mxu0 0.0
      %516 = vmatprep.subr.mxu0 0.0
      %517 = vmatpush1.msra.mxu0 0.0
      %518 = vmatprep.subr.mxu0 0.0
      %519 = vmatpush1.msra.mxu0 0.0
      %520 = vmatprep.subr.mxu0 0.0
      %521 = vmatpush1.msra.mxu0 0.0
      %522 = vmatprep.subr.mxu0 0.0
      %523 = vmatpush1.msra.mxu0 0.0
      %524 = vmatprep.subr.mxu0 0.0
      %525 = vmatpush1.msra.mxu0 0.0
      %526 = vmatprep.subr.mxu0 0.0
      %527 = vmatpush1.msra.mxu0 0.0
      %528 = vmatprep.subr.mxu0 0.0
      %529 = vmatpush1.msra.mxu0 0.0
      %530 = vmatprep.subr.mxu0 0.0
      %531 = vmatpush1.msra.mxu0 0.0
      %532 = vmatprep.subr.mxu0 0.0
      %533 = vmatpush1.msra.mxu0 0.0
      %534 = vmatprep.subr.mxu0 0.0
      %535 = vmatpush1.msra.mxu0 0.0
      %536 = vmatprep.subr.mxu0 0.0
      %537 = vmatpush1.msra.mxu0 0.0
      %538 = vmatprep.subr.mxu0 0.0
      %539 = vmatpush1.msra.mxu0 0.0
      %540 = vmatprep.subr.mxu0 0.0
      %541 = vmatpush1.msra.mxu0 0.0
      %542 = vmatprep.subr.mxu0 0.0
      %543 = vmatpush1.msra.mxu0 0.0
      %544 = vmatprep.subr.mxu0 0.0
      %545 = vmatpush1.msra.mxu0 0.0
      %546 = vmatprep.subr.mxu0 0.0
      %547 = vmatpush1.msra.mxu0 0.0
      %548 = vmatprep.subr.mxu0 0.0
      %549 = vmatpush1.msra.mxu0 0.0
      %550 = vmatprep.subr.mxu0 0.0
      %551 = vmatpush1.msra.mxu0 0.0
      %552 = vmatprep.subr.mxu0 0.0
      %553 = vmatpush1.msra.mxu0 0.0
      %554 = vmatprep.subr.mxu0 0.0
      %555 = vmatpush1.msra.mxu0 0.0
      %556 = vmatprep.subr.mxu0 0.0
      %557 = vmatpush1.msra.mxu0 0.0
      %558 = vmatprep.subr.mxu0 0.0
      %559 = vmatpush1.msra.mxu0 0.0
      %560 = vmatprep.subr.mxu0 0.0
      %561 = vmatpush1.msra.mxu0 0.0
      %562 = vmatprep.subr.mxu0 0.0
      %563 = vmatpush1.msra.mxu0 0.0
      %564 = vmatprep.subr.mxu0 0.0
      %565 = vmatpush1.msra.mxu0 0.0
      %566 = vmatprep.subr.mxu0 0.0
      %567 = vmatpush1.msra.mxu0 0.0
      %568 = vmatprep.subr.mxu0 0.0
      %569 = vmatpush1.msra.mxu0 0.0
      %570 = vmatprep.subr.mxu0 0.0
      %571 = vmatpush1.msra.mxu0 0.0
      %572 = vmatprep.subr.mxu0 0.0
      %573 = vmatpush1.msra.mxu0 0.0
      %574 = vmatprep.mubr.f32.mxu0 0.0
      %575 = vmatmul.mubr.f32.gmra.mrb[0].mxu0 %v502
      %v576 = vpop.f32.mrb[0].mxu0
      %v577 = vadd.f32 0.0, %v576
      %v578 = vpop.f32.mrb[0].mxu0
      %v579 = vadd.f32 0.0, %v578
      %580 = vdwg.mxu0
      %581 = vmatprep.subr.mxu0 0.0
      %582 = vmatpush1.msra.mxu0 %v508
      %583 = vmatprep.subr.mxu0 0.0
      %584 = vmatpush1.msra.mxu0 0.0
      %585 = vmatprep.subr.mxu0 0.0
      %586 = vmatpush1.msra.mxu0 0.0
      %587 = vmatprep.subr.mxu0 0.0
      %588 = vmatpush1.msra.mxu0 0.0
      %589 = vmatprep.subr.mxu0 0.0
      %590 = vmatpush1.msra.mxu0 0.0
      %591 = vmatprep.subr.mxu0 0.0
      %592 = vmatpush1.msra.mxu0 0.0
      %593 = vmatprep.subr.mxu0 0.0
      %594 = vmatpush1.msra.mxu0 0.0
      %595 = vmatprep.subr.mxu0 0.0
      %596 = vmatpush1.msra.mxu0 0.0
      %597 = vmatprep.subr.mxu0 0.0
      %598 = vmatpush1.msra.mxu0 0.0
      %599 = vmatprep.subr.mxu0 0.0
      %600 = vmatpush1.msra.mxu0 0.0
      %601 = vmatprep.subr.mxu0 0.0
      %602 = vmatpush1.msra.mxu0 0.0
      %603 = vmatprep.subr.mxu0 0.0
      %604 = vmatpush1.msra.mxu0 0.0
      %605 = vmatprep.subr.mxu0 0.0
      %606 = vmatpush1.msra.mxu0 0.0
      %607 = vmatprep.subr.mxu0 0.0
      %608 = vmatpush1.msra.mxu0 0.0
      %609 = vmatprep.subr.mxu0 0.0
      %610 = vmatpush1.msra.mxu0 0.0
      %611 = vmatprep.subr.mxu0 0.0
      %612 = vmatpush1.msra.mxu0 0.0
      %613 = vmatprep.subr.mxu0 0.0
      %614 = vmatpush1.msra.mxu0 0.0
      %615 = vmatprep.subr.mxu0 0.0
      %616 = vmatpush1.msra.mxu0 0.0
      %617 = vmatprep.subr.mxu0 0.0
      %618 = vmatpush1.msra.mxu0 0.0
      %619 = vmatprep.subr.mxu0 0.0
      %620 = vmatpush1.msra.mxu0 0.0
      %621 = vmatprep.subr.mxu0 0.0
      %622 = vmatpush1.msra.mxu0 0.0
      %623 = vmatprep.subr.mxu0 0.0
      %624 = vmatpush1.msra.mxu0 0.0
      %625 = vmatprep.subr.mxu0 0.0
      %626 = vmatpush1.msra.mxu0 0.0
      %627 = vmatprep.subr.mxu0 0.0
      %628 = vmatpush1.msra.mxu0 0.0
      %629 = vmatprep.subr.mxu0 0.0
      %630 = vmatpush1.msra.mxu0 0.0
      %631 = vmatprep.subr.mxu0 0.0
      %632 = vmatpush1.msra.mxu0 0.0
      %633 = vmatprep.subr.mxu0 0.0
      %634 = vmatpush1.msra.mxu0 0.0
      %635 = vmatprep.subr.mxu0 0.0
      %636 = vmatpush1.msra.mxu0 0.0
      %637 = vmatprep.subr.mxu0 0.0
      %638 = vmatpush1.msra.mxu0 0.0
      %639 = vmatprep.subr.mxu0 0.0
      %640 = vmatpush1.msra.mxu0 0.0
      %641 = vmatprep.subr.mxu0 0.0
      %642 = vmatpush1.msra.mxu0 0.0
      %643 = vmatprep.subr.mxu0 0.0
      %644 = vmatpush1.msra.mxu0 0.0
      %645 = vmatprep.mubr.f32.mxu0 0.0
      %646 = vmatmul.mubr.f32.gmra.mrb[0].mxu0 %v502
      %v647 = vpop.f32.mrb[0].mxu0
      %v648 = vadd.f32 0.0, %v647
      %v649 = vpop.f32.mrb[0].mxu0
      %650 = vdwg.mxu0
      %v651 = vadd.f32 %v416, %v577
      %v652 = vadd.f32 %v418, %v579
      %v653 = vadd.f32 %v487, %v648
      %s654 = scalar_lea.vmem %s1, 24
      %v655 = vld [vmem:[%s654] sm:$0xff]
      %656 = vrot.lane.b32.xlu0 %v171, 110
      %v657 = vpop.permute.xlu0 %656
      %658 = vrot.lane.b32.xlu0 %v178, 110
      %v659 = vpop.permute.xlu0 %658
      %660 = vrot.lane.b32.xlu0 %v172, 110
      %v661 = vpop.permute.xlu0 %660
      %vm662 = vcmask 900096
      %v663 = vsel %vm662, %v657, %v659
      %v664 = vsel %vm662, %v659, %v661
      %v666 = vsel %vm188, %v655, 0
      %v668 = vsel %vm192, %v663, 0
      %v670 = vsel %vm192, %v664, 0
      %v672 = vsel %vm192, %v661, 0
      %674 = vmatprep.subr.mxu0 %v670
      %675 = vmatpush1.msra.mxu0 %v668
      %676 = vmatprep.subr.mxu0 0.0
      %677 = vmatpush1.msra.mxu0 0.0
      %678 = vmatprep.subr.mxu0 0.0
      %679 = vmatpush1.msra.mxu0 0.0
      %680 = vmatprep.subr.mxu0 0.0
      %681 = vmatpush1.msra.mxu0 0.0
      %682 = vmatprep.subr.mxu0 0.0
      %683 = vmatpush1.msra.mxu0 0.0
      %684 = vmatprep.subr.mxu0 0.0
      %685 = vmatpush1.msra.mxu0 0.0
      %686 = vmatprep.subr.mxu0 0.0
      %687 = vmatpush1.msra.mxu0 0.0
      %688 = vmatprep.subr.mxu0 0.0
      %689 = vmatpush1.msra.mxu0 0.0
      %690 = vmatprep.subr.mxu0 0.0
      %691 = vmatpush1.msra.mxu0 0.0
      %692 = vmatprep.subr.mxu0 0.0
      %693 = vmatpush1.msra.mxu0 0.0
      %694 = vmatprep.subr.mxu0 0.0
      %695 = vmatpush1.msra.mxu0 0.0
      %696 = vmatprep.subr.mxu0 0.0
      %697 = vmatpush1.msra.mxu0 0.0
      %698 = vmatprep.subr.mxu0 0.0
      %699 = vmatpush1.msra.mxu0 0.0
      %700 = vmatprep.subr.mxu0 0.0
      %701 = vmatpush1.msra.mxu0 0.0
      %702 = vmatprep.subr.mxu0 0.0
      %703 = vmatpush1.msra.mxu0 0.0
      %704 = vmatprep.subr.mxu0 0.0
      %705 = vmatpush1.msra.mxu0 0.0
      %706 = vmatprep.subr.mxu0 0.0
      %707 = vmatpush1.msra.mxu0 0.0
      %708 = vmatprep.subr.mxu0 0.0
      %709 = vmatpush1.msra.mxu0 0.0
      %710 = vmatprep.subr.mxu0 0.0
      %711 = vmatpush1.msra.mxu0 0.0
      %712 = vmatprep.subr.mxu0 0.0
      %713 = vmatpush1.msra.mxu0 0.0
      %714 = vmatprep.subr.mxu0 0.0
      %715 = vmatpush1.msra.mxu0 0.0
      %716 = vmatprep.subr.mxu0 0.0
      %717 = vmatpush1.msra.mxu0 0.0
      %718 = vmatprep.subr.mxu0 0.0
      %719 = vmatpush1.msra.mxu0 0.0
      %720 = vmatprep.subr.mxu0 0.0
      %721 = vmatpush1.msra.mxu0 0.0
      %722 = vmatprep.subr.mxu0 0.0
      %723 = vmatpush1.msra.mxu0 0.0
      %724 = vmatprep.subr.mxu0 0.0
      %725 = vmatpush1.msra.mxu0 0.0
      %726 = vmatprep.subr.mxu0 0.0
      %727 = vmatpush1.msra.mxu0 0.0
      %728 = vmatprep.subr.mxu0 0.0
      %729 = vmatpush1.msra.mxu0 0.0
      %730 = vmatprep.subr.mxu0 0.0
      %731 = vmatpush1.msra.mxu0 0.0
      %732 = vmatprep.subr.mxu0 0.0
      %733 = vmatpush1.msra.mxu0 0.0
      %734 = vmatprep.subr.mxu0 0.0
      %735 = vmatpush1.msra.mxu0 0.0
      %736 = vmatprep.subr.mxu0 0.0
      %737 = vmatpush1.msra.mxu0 0.0
      %738 = vmatprep.mubr.f32.mxu0 0.0
      %739 = vmatmul.mubr.f32.gmra.mrb[0].mxu0 %v666
      %v740 = vpop.f32.mrb[0].mxu0
      %v741 = vadd.f32 0.0, %v740
      %v742 = vpop.f32.mrb[0].mxu0
      %v743 = vadd.f32 0.0, %v742
      %744 = vdwg.mxu0
      %745 = vmatprep.subr.mxu0 0.0
      %746 = vmatpush1.msra.mxu0 %v672
      %747 = vmatprep.subr.mxu0 0.0
      %748 = vmatpush1.msra.mxu0 0.0
      %749 = vmatprep.subr.mxu0 0.0
      %750 = vmatpush1.msra.mxu0 0.0
      %751 = vmatprep.subr.mxu0 0.0
      %752 = vmatpush1.msra.mxu0 0.0
      %753 = vmatprep.subr.mxu0 0.0
      %754 = vmatpush1.msra.mxu0 0.0
      %755 = vmatprep.subr.mxu0 0.0
      %756 = vmatpush1.msra.mxu0 0.0
      %757 = vmatprep.subr.mxu0 0.0
      %758 = vmatpush1.msra.mxu0 0.0
      %759 = vmatprep.subr.mxu0 0.0
      %760 = vmatpush1.msra.mxu0 0.0
      %761 = vmatprep.subr.mxu0 0.0
      %762 = vmatpush1.msra.mxu0 0.0
      %763 = vmatprep.subr.mxu0 0.0
      %764 = vmatpush1.msra.mxu0 0.0
      %765 = vmatprep.subr.mxu0 0.0
      %766 = vmatpush1.msra.mxu0 0.0
      %767 = vmatprep.subr.mxu0 0.0
      %768 = vmatpush1.msra.mxu0 0.0
      %769 = vmatprep.subr.mxu0 0.0
      %770 = vmatpush1.msra.mxu0 0.0
      %771 = vmatprep.subr.mxu0 0.0
      %772 = vmatpush1.msra.mxu0 0.0
      %773 = vmatprep.subr.mxu0 0.0
      %774 = vmatpush1.msra.mxu0 0.0
      %775 = vmatprep.subr.mxu0 0.0
      %776 = vmatpush1.msra.mxu0 0.0
      %777 = vmatprep.subr.mxu0 0.0
      %778 = vmatpush1.msra.mxu0 0.0
      %779 = vmatprep.subr.mxu0 0.0
      %780 = vmatpush1.msra.mxu0 0.0
      %781 = vmatprep.subr.mxu0 0.0
      %782 = vmatpush1.msra.mxu0 0.0
      %783 = vmatprep.subr.mxu0 0.0
      %784 = vmatpush1.msra.mxu0 0.0
      %785 = vmatprep.subr.mxu0 0.0
      %786 = vmatpush1.msra.mxu0 0.0
      %787 = vmatprep.subr.mxu0 0.0
      %788 = vmatpush1.msra.mxu0 0.0
      %789 = vmatprep.subr.mxu0 0.0
      %790 = vmatpush1.msra.mxu0 0.0
      %791 = vmatprep.subr.mxu0 0.0
      %792 = vmatpush1.msra.mxu0 0.0
      %793 = vmatprep.subr.mxu0 0.0
      %794 = vmatpush1.msra.mxu0 0.0
      %795 = vmatprep.subr.mxu0 0.0
      %796 = vmatpush1.msra.mxu0 0.0
      %797 = vmatprep.subr.mxu0 0.0
      %798 = vmatpush1.msra.mxu0 0.0
      %799 = vmatprep.subr.mxu0 0.0
      %800 = vmatpush1.msra.mxu0 0.0
      %801 = vmatprep.subr.mxu0 0.0
      %802 = vmatpush1.msra.mxu0 0.0
      %803 = vmatprep.subr.mxu0 0.0
      %804 = vmatpush1.msra.mxu0 0.0
      %805 = vmatprep.subr.mxu0 0.0
      %806 = vmatpush1.msra.mxu0 0.0
      %807 = vmatprep.subr.mxu0 0.0
      %808 = vmatpush1.msra.mxu0 0.0
      %809 = vmatprep.mubr.f32.mxu0 0.0
      %810 = vmatmul.mubr.f32.gmra.mrb[0].mxu0 %v666
      %v811 = vpop.f32.mrb[0].mxu0
      %v812 = vadd.f32 0.0, %v811
      %v813 = vpop.f32.mrb[0].mxu0
      %814 = vdwg.mxu0
      %v815 = vadd.f32 %v651, %v741
      %v816 = vadd.f32 %v652, %v743
      %v817 = vadd.f32 %v653, %v812
      %s818 = scalar_lea.vmem %s1, 32
      %v819 = vld [vmem:[%s818] sm:$0xff]
      %820 = vrot.lane.b32.xlu0 %v171, 109
      %v821 = vpop.permute.xlu0 %820
      %822 = vrot.lane.b32.xlu0 %v178, 109
      %v823 = vpop.permute.xlu0 %822
      %824 = vrot.lane.b32.xlu0 %v172, 109
      %v825 = vpop.permute.xlu0 %824
      %vm826 = vcmask 891904
      %v827 = vsel %vm826, %v821, %v823
      %v828 = vsel %vm826, %v823, %v825
      %v830 = vsel %vm188, %v819, 0
      %v832 = vsel %vm192, %v827, 0
      %v834 = vsel %vm192, %v828, 0
      %v836 = vsel %vm192, %v825, 0
      %838 = vmatprep.subr.mxu0 %v834
      %839 = vmatpush1.msra.mxu0 %v832
      %840 = vmatprep.subr.mxu0 0.0
      %841 = vmatpush1.msra.mxu0 0.0
      %842 = vmatprep.subr.mxu0 0.0
      %843 = vmatpush1.msra.mxu0 0.0
      %844 = vmatprep.subr.mxu0 0.0
      %845 = vmatpush1.msra.mxu0 0.0
      %846 = vmatprep.subr.mxu0 0.0
      %847 = vmatpush1.msra.mxu0 0.0
      %848 = vmatprep.subr.mxu0 0.0
      %849 = vmatpush1.msra.mxu0 0.0
      %850 = vmatprep.subr.mxu0 0.0
      %851 = vmatpush1.msra.mxu0 0.0
      %852 = vmatprep.subr.mxu0 0.0
      %853 = vmatpush1.msra.mxu0 0.0
      %854 = vmatprep.subr.mxu0 0.0
      %855 = vmatpush1.msra.mxu0 0.0
      %856 = vmatprep.subr.mxu0 0.0
      %857 = vmatpush1.msra.mxu0 0.0
      %858 = vmatprep.subr.mxu0 0.0
      %859 = vmatpush1.msra.mxu0 0.0
      %860 = vmatprep.subr.mxu0 0.0
      %861 = vmatpush1.msra.mxu0 0.0
      %862 = vmatprep.subr.mxu0 0.0
      %863 = vmatpush1.msra.mxu0 0.0
      %864 = vmatprep.subr.mxu0 0.0
      %865 = vmatpush1.msra.mxu0 0.0
      %866 = vmatprep.subr.mxu0 0.0
      %867 = vmatpush1.msra.mxu0 0.0
      %868 = vmatprep.subr.mxu0 0.0
      %869 = vmatpush1.msra.mxu0 0.0
      %870 = vmatprep.subr.mxu0 0.0
      %871 = vmatpush1.msra.mxu0 0.0
      %872 = vmatprep.subr.mxu0 0.0
      %873 = vmatpush1.msra.mxu0 0.0
      %874 = vmatprep.subr.mxu0 0.0
      %875 = vmatpush1.msra.mxu0 0.0
      %876 = vmatprep.subr.mxu0 0.0
      %877 = vmatpush1.msra.mxu0 0.0
      %878 = vmatprep.subr.mxu0 0.0
      %879 = vmatpush1.msra.mxu0 0.0
      %880 = vmatprep.subr.mxu0 0.0
      %881 = vmatpush1.msra.mxu0 0.0
      %882 = vmatprep.subr.mxu0 0.0
      %883 = vmatpush1.msra.mxu0 0.0
      %884 = vmatprep.subr.mxu0 0.0
      %885 = vmatpush1.msra.mxu0 0.0
      %886 = vmatprep.subr.mxu0 0.0
      %887 = vmatpush1.msra.mxu0 0.0
      %888 = vmatprep.subr.mxu0 0.0
      %889 = vmatpush1.msra.mxu0 0.0
      %890 = vmatprep.subr.mxu0 0.0
      %891 = vmatpush1.msra.mxu0 0.0
      %892 = vmatprep.subr.mxu0 0.0
      %893 = vmatpush1.msra.mxu0 0.0
      %894 = vmatprep.subr.mxu0 0.0
      %895 = vmatpush1.msra.mxu0 0.0
      %896 = vmatprep.subr.mxu0 0.0
      %897 = vmatpush1.msra.mxu0 0.0
      %898 = vmatprep.subr.mxu0 0.0
      %899 = vmatpush1.msra.mxu0 0.0
      %900 = vmatprep.subr.mxu0 0.0
      %901 = vmatpush1.msra.mxu0 0.0
      %902 = vmatprep.mubr.f32.mxu0 0.0
      %903 = vmatmul.mubr.f32.gmra.mrb[0].mxu0 %v830
      %v904 = vpop.f32.mrb[0].mxu0
      %v905 = vadd.f32 0.0, %v904
      %v906 = vpop.f32.mrb[0].mxu0
      %v907 = vadd.f32 0.0, %v906
      %908 = vdwg.mxu0
      %909 = vmatprep.subr.mxu0 0.0
      %910 = vmatpush1.msra.mxu0 %v836
      %911 = vmatprep.subr.mxu0 0.0
      %912 = vmatpush1.msra.mxu0 0.0
      %913 = vmatprep.subr.mxu0 0.0
      %914 = vmatpush1.msra.mxu0 0.0
      %915 = vmatprep.subr.mxu0 0.0
      %916 = vmatpush1.msra.mxu0 0.0
      %917 = vmatprep.subr.mxu0 0.0
      %918 = vmatpush1.msra.mxu0 0.0
      %919 = vmatprep.subr.mxu0 0.0
      %920 = vmatpush1.msra.mxu0 0.0
      %921 = vmatprep.subr.mxu0 0.0
      %922 = vmatpush1.msra.mxu0 0.0
      %923 = vmatprep.subr.mxu0 0.0
      %924 = vmatpush1.msra.mxu0 0.0
      %925 = vmatprep.subr.mxu0 0.0
      %926 = vmatpush1.msra.mxu0 0.0
      %927 = vmatprep.subr.mxu0 0.0
      %928 = vmatpush1.msra.mxu0 0.0
      %929 = vmatprep.subr.mxu0 0.0
      %930 = vmatpush1.msra.mxu0 0.0
      %931 = vmatprep.subr.mxu0 0.0
      %932 = vmatpush1.msra.mxu0 0.0
      %933 = vmatprep.subr.mxu0 0.0
      %934 = vmatpush1.msra.mxu0 0.0
      %935 = vmatprep.subr.mxu0 0.0
      %936 = vmatpush1.msra.mxu0 0.0
      %937 = vmatprep.subr.mxu0 0.0
      %938 = vmatpush1.msra.mxu0 0.0
      %939 = vmatprep.subr.mxu0 0.0
      %940 = vmatpush1.msra.mxu0 0.0
      %941 = vmatprep.subr.mxu0 0.0
      %942 = vmatpush1.msra.mxu0 0.0
      %943 = vmatprep.subr.mxu0 0.0
      %944 = vmatpush1.msra.mxu0 0.0
      %945 = vmatprep.subr.mxu0 0.0
      %946 = vmatpush1.msra.mxu0 0.0
      %947 = vmatprep.subr.mxu0 0.0
      %948 = vmatpush1.msra.mxu0 0.0
      %949 = vmatprep.subr.mxu0 0.0
      %950 = vmatpush1.msra.mxu0 0.0
      %951 = vmatprep.subr.mxu0 0.0
      %952 = vmatpush1.msra.mxu0 0.0
      %953 = vmatprep.subr.mxu0 0.0
      %954 = vmatpush1.msra.mxu0 0.0
      %955 = vmatprep.subr.mxu0 0.0
      %956 = vmatpush1.msra.mxu0 0.0
      %957 = vmatprep.subr.mxu0 0.0
      %958 = vmatpush1.msra.mxu0 0.0
      %959 = vmatprep.subr.mxu0 0.0
      %960 = vmatpush1.msra.mxu0 0.0
      %961 = vmatprep.subr.mxu0 0.0
      %962 = vmatpush1.msra.mxu0 0.0
      %963 = vmatprep.subr.mxu0 0.0
      %964 = vmatpush1.msra.mxu0 0.0
      %965 = vmatprep.subr.mxu0 0.0
      %966 = vmatpush1.msra.mxu0 0.0
      %967 = vmatprep.subr.mxu0 0.0
      %968 = vmatpush1.msra.mxu0 0.0
      %969 = vmatprep.subr.mxu0 0.0
      %970 = vmatpush1.msra.mxu0 0.0
      %971 = vmatprep.subr.mxu0 0.0
      %972 = vmatpush1.msra.mxu0 0.0
      %973 = vmatprep.mubr.f32.mxu0 0.0
      %974 = vmatmul.mubr.f32.gmra.mrb[0].mxu0 %v830
      %v975 = vpop.f32.mrb[0].mxu0
      %v976 = vadd.f32 0.0, %v975
      %v977 = vpop.f32.mrb[0].mxu0
      %978 = vdwg.mxu0
      %v979 = vadd.f32 %v815, %v905
      %v980 = vadd.f32 %v816, %v907
      %v981 = vadd.f32 %v817, %v976
      %s982 = scalar_lea.vmem %s1, 40
      %v983 = vld [vmem:[%s982] sm:$0xff]
      %984 = vrot.lane.b32.xlu0 %v171, 108
      %v985 = vpop.permute.xlu0 %984
      %986 = vrot.lane.b32.xlu0 %v178, 108
      %v987 = vpop.permute.xlu0 %986
      %988 = vrot.lane.b32.xlu0 %v172, 108
      %v989 = vpop.permute.xlu0 %988
      %vm990 = vcmask 883712
      %v991 = vsel %vm990, %v985, %v987
      %v992 = vsel %vm990, %v987, %v989
      %v994 = vsel %vm188, %v983, 0
      %v996 = vsel %vm192, %v991, 0
      %v998 = vsel %vm192, %v992, 0
      %v1000 = vsel %vm192, %v989, 0
      %1002 = vmatprep.subr.mxu0 %v998
      %1003 = vmatpush1.msra.mxu0 %v996
      %1004 = vmatprep.subr.mxu0 0.0
      %1005 = vmatpush1.msra.mxu0 0.0
      %1006 = vmatprep.subr.mxu0 0.0
      %1007 = vmatpush1.msra.mxu0 0.0
      %1008 = vmatprep.subr.mxu0 0.0
      %1009 = vmatpush1.msra.mxu0 0.0
      %1010 = vmatprep.subr.mxu0 0.0
      %1011 = vmatpush1.msra.mxu0 0.0
      %1012 = vmatprep.subr.mxu0 0.0
      %1013 = vmatpush1.msra.mxu0 0.0
      %1014 = vmatprep.subr.mxu0 0.0
      %1015 = vmatpush1.msra.mxu0 0.0
      %1016 = vmatprep.subr.mxu0 0.0
      %1017 = vmatpush1.msra.mxu0 0.0
      %1018 = vmatprep.subr.mxu0 0.0
      %1019 = vmatpush1.msra.mxu0 0.0
      %1020 = vmatprep.subr.mxu0 0.0
      %1021 = vmatpush1.msra.mxu0 0.0
      %1022 = vmatprep.subr.mxu0 0.0
      %1023 = vmatpush1.msra.mxu0 0.0
      %1024 = vmatprep.subr.mxu0 0.0
      %1025 = vmatpush1.msra.mxu0 0.0
      %1026 = vmatprep.subr.mxu0 0.0
      %1027 = vmatpush1.msra.mxu0 0.0
      %1028 = vmatprep.subr.mxu0 0.0
      %1029 = vmatpush1.msra.mxu0 0.0
      %1030 = vmatprep.subr.mxu0 0.0
      %1031 = vmatpush1.msra.mxu0 0.0
      %1032 = vmatprep.subr.mxu0 0.0
      %1033 = vmatpush1.msra.mxu0 0.0
      %1034 = vmatprep.subr.mxu0 0.0
      %1035 = vmatpush1.msra.mxu0 0.0
      %1036 = vmatprep.subr.mxu0 0.0
      %1037 = vmatpush1.msra.mxu0 0.0
      %1038 = vmatprep.subr.mxu0 0.0
      %1039 = vmatpush1.msra.mxu0 0.0
      %1040 = vmatprep.subr.mxu0 0.0
      %1041 = vmatpush1.msra.mxu0 0.0
      %1042 = vmatprep.subr.mxu0 0.0
      %1043 = vmatpush1.msra.mxu0 0.0
      %1044 = vmatprep.subr.mxu0 0.0
      %1045 = vmatpush1.msra.mxu0 0.0
      %1046 = vmatprep.subr.mxu0 0.0
      %1047 = vmatpush1.msra.mxu0 0.0
      %1048 = vmatprep.subr.mxu0 0.0
      %1049 = vmatpush1.msra.mxu0 0.0
      %1050 = vmatprep.subr.mxu0 0.0
      %1051 = vmatpush1.msra.mxu0 0.0
      %1052 = vmatprep.subr.mxu0 0.0
      %1053 = vmatpush1.msra.mxu0 0.0
      %1054 = vmatprep.subr.mxu0 0.0
      %1055 = vmatpush1.msra.mxu0 0.0
      %1056 = vmatprep.subr.mxu0 0.0
      %1057 = vmatpush1.msra.mxu0 0.0
      %1058 = vmatprep.subr.mxu0 0.0
      %1059 = vmatpush1.msra.mxu0 0.0
      %1060 = vmatprep.subr.mxu0 0.0
      %1061 = vmatpush1.msra.mxu0 0.0
      %1062 = vmatprep.subr.mxu0 0.0
      %1063 = vmatpush1.msra.mxu0 0.0
      %1064 = vmatprep.subr.mxu0 0.0
      %1065 = vmatpush1.msra.mxu0 0.0
      %1066 = vmatprep.mubr.f32.mxu0 0.0
      %1067 = vmatmul.mubr.f32.gmra.mrb[0].mxu0 %v994
      %v1068 = vpop.f32.mrb[0].mxu0
      %v1069 = vadd.f32 0.0, %v1068
      %v1070 = vpop.f32.mrb[0].mxu0
      %v1071 = vadd.f32 0.0, %v1070
      %1072 = vdwg.mxu0
      %1073 = vmatprep.subr.mxu0 0.0
      %1074 = vmatpush1.msra.mxu0 %v1000
      %1075 = vmatprep.subr.mxu0 0.0
      %1076 = vmatpush1.msra.mxu0 0.0
      %1077 = vmatprep.subr.mxu0 0.0
      %1078 = vmatpush1.msra.mxu0 0.0
      %1079 = vmatprep.subr.mxu0 0.0
      %1080 = vmatpush1.msra.mxu0 0.0
      %1081 = vmatprep.subr.mxu0 0.0
      %1082 = vmatpush1.msra.mxu0 0.0
      %1083 = vmatprep.subr.mxu0 0.0
      %1084 = vmatpush1.msra.mxu0 0.0
      %1085 = vmatprep.subr.mxu0 0.0
      %1086 = vmatpush1.msra.mxu0 0.0
      %1087 = vmatprep.subr.mxu0 0.0
      %1088 = vmatpush1.msra.mxu0 0.0
      %1089 = vmatprep.subr.mxu0 0.0
      %1090 = vmatpush1.msra.mxu0 0.0
      %1091 = vmatprep.subr.mxu0 0.0
      %1092 = vmatpush1.msra.mxu0 0.0
      %1093 = vmatprep.subr.mxu0 0.0
      %1094 = vmatpush1.msra.mxu0 0.0
      %1095 = vmatprep.subr.mxu0 0.0
      %1096 = vmatpush1.msra.mxu0 0.0
      %1097 = vmatprep.subr.mxu0 0.0
      %1098 = vmatpush1.msra.mxu0 0.0
      %1099 = vmatprep.subr.mxu0 0.0
      %1100 = vmatpush1.msra.mxu0 0.0
      %1101 = vmatprep.subr.mxu0 0.0
      %1102 = vmatpush1.msra.mxu0 0.0
      %1103 = vmatprep.subr.mxu0 0.0
      %1104 = vmatpush1.msra.mxu0 0.0
      %1105 = vmatprep.subr.mxu0 0.0
      %1106 = vmatpush1.msra.mxu0 0.0
      %1107 = vmatprep.subr.mxu0 0.0
      %1108 = vmatpush1.msra.mxu0 0.0
      %1109 = vmatprep.subr.mxu0 0.0
      %1110 = vmatpush1.msra.mxu0 0.0
      %1111 = vmatprep.subr.mxu0 0.0
      %1112 = vmatpush1.msra.mxu0 0.0
      %1113 = vmatprep.subr.mxu0 0.0
      %1114 = vmatpush1.msra.mxu0 0.0
      %1115 = vmatprep.subr.mxu0 0.0
      %1116 = vmatpush1.msra.mxu0 0.0
      %1117 = vmatprep.subr.mxu0 0.0
      %1118 = vmatpush1.msra.mxu0 0.0
      %1119 = vmatprep.subr.mxu0 0.0
      %1120 = vmatpush1.msra.mxu0 0.0
      %1121 = vmatprep.subr.mxu0 0.0
      %1122 = vmatpush1.msra.mxu0 0.0
      %1123 = vmatprep.subr.mxu0 0.0
      %1124 = vmatpush1.msra.mxu0 0.0
      %1125 = vmatprep.subr.mxu0 0.0
      %1126 = vmatpush1.msra.mxu0 0.0
      %1127 = vmatprep.subr.mxu0 0.0
      %1128 = vmatpush1.msra.mxu0 0.0
      %1129 = vmatprep.subr.mxu0 0.0
      %1130 = vmatpush1.msra.mxu0 0.0
      %1131 = vmatprep.subr.mxu0 0.0
      %1132 = vmatpush1.msra.mxu0 0.0
      %1133 = vmatprep.subr.mxu0 0.0
      %1134 = vmatpush1.msra.mxu0 0.0
      %1135 = vmatprep.subr.mxu0 0.0
      %1136 = vmatpush1.msra.mxu0 0.0
      %1137 = vmatprep.mubr.f32.mxu0 0.0
      %1138 = vmatmul.mubr.f32.gmra.mrb[0].mxu0 %v994
      %v1139 = vpop.f32.mrb[0].mxu0
      %v1140 = vadd.f32 0.0, %v1139
      %v1141 = vpop.f32.mrb[0].mxu0
      %1142 = vdwg.mxu0
      %v1143 = vadd.f32 %v979, %v1069
      %v1144 = vadd.f32 %v980, %v1071
      %v1145 = vadd.f32 %v981, %v1140
      %s1146 = scalar_lea.vmem %s1, 48
      %v1147 = vld [vmem:[%s1146] sm:$0xff]
      %1148 = vrot.lane.b32.xlu0 %v171, 92
      %v1149 = vpop.permute.xlu0 %1148
      %1150 = vrot.lane.b32.xlu0 %v178, 92
      %v1151 = vpop.permute.xlu0 %1150
      %1152 = vrot.lane.b32.xlu0 %v172, 92
      %v1153 = vpop.permute.xlu0 %1152
      %vm1154 = vcmask 752640
      %v1155 = vsel %vm1154, %v1149, %v1151
      %v1156 = vsel %vm1154, %v1151, %v1153
      %v1158 = vsel %vm188, %v1147, 0
      %v1160 = vsel %vm192, %v1155, 0
      %v1162 = vsel %vm192, %v1156, 0
      %v1164 = vsel %vm192, %v1153, 0
      %1166 = vmatprep.subr.mxu0 %v1162
      %1167 = vmatpush1.msra.mxu0 %v1160
      %1168 = vmatprep.subr.mxu0 0.0
      %1169 = vmatpush1.msra.mxu0 0.0
      %1170 = vmatprep.subr.mxu0 0.0
      %1171 = vmatpush1.msra.mxu0 0.0
      %1172 = vmatprep.subr.mxu0 0.0
      %1173 = vmatpush1.msra.mxu0 0.0
      %1174 = vmatprep.subr.mxu0 0.0
      %1175 = vmatpush1.msra.mxu0 0.0
      %1176 = vmatprep.subr.mxu0 0.0
      %1177 = vmatpush1.msra.mxu0 0.0
      %1178 = vmatprep.subr.mxu0 0.0
      %1179 = vmatpush1.msra.mxu0 0.0
      %1180 = vmatprep.subr.mxu0 0.0
      %1181 = vmatpush1.msra.mxu0 0.0
      %1182 = vmatprep.subr.mxu0 0.0
      %1183 = vmatpush1.msra.mxu0 0.0
      %1184 = vmatprep.subr.mxu0 0.0
      %1185 = vmatpush1.msra.mxu0 0.0
      %1186 = vmatprep.subr.mxu0 0.0
      %1187 = vmatpush1.msra.mxu0 0.0
      %1188 = vmatprep.subr.mxu0 0.0
      %1189 = vmatpush1.msra.mxu0 0.0
      %1190 = vmatprep.subr.mxu0 0.0
      %1191 = vmatpush1.msra.mxu0 0.0
      %1192 = vmatprep.subr.mxu0 0.0
      %1193 = vmatpush1.msra.mxu0 0.0
      %1194 = vmatprep.subr.mxu0 0.0
      %1195 = vmatpush1.msra.mxu0 0.0
      %1196 = vmatprep.subr.mxu0 0.0
      %1197 = vmatpush1.msra.mxu0 0.0
      %1198 = vmatprep.subr.mxu0 0.0
      %1199 = vmatpush1.msra.mxu0 0.0
      %1200 = vmatprep.subr.mxu0 0.0
      %1201 = vmatpush1.msra.mxu0 0.0
      %1202 = vmatprep.subr.mxu0 0.0
      %1203 = vmatpush1.msra.mxu0 0.0
      %1204 = vmatprep.subr.mxu0 0.0
      %1205 = vmatpush1.msra.mxu0 0.0
      %1206 = vmatprep.subr.mxu0 0.0
      %1207 = vmatpush1.msra.mxu0 0.0
      %1208 = vmatprep.subr.mxu0 0.0
      %1209 = vmatpush1.msra.mxu0 0.0
      %1210 = vmatprep.subr.mxu0 0.0
      %1211 = vmatpush1.msra.mxu0 0.0
      %1212 = vmatprep.subr.mxu0 0.0
      %1213 = vmatpush1.msra.mxu0 0.0
      %1214 = vmatprep.subr.mxu0 0.0
      %1215 = vmatpush1.msra.mxu0 0.0
      %1216 = vmatprep.subr.mxu0 0.0
      %1217 = vmatpush1.msra.mxu0 0.0
      %1218 = vmatprep.subr.mxu0 0.0
      %1219 = vmatpush1.msra.mxu0 0.0
      %1220 = vmatprep.subr.mxu0 0.0
      %1221 = vmatpush1.msra.mxu0 0.0
      %1222 = vmatprep.subr.mxu0 0.0
      %1223 = vmatpush1.msra.mxu0 0.0
      %1224 = vmatprep.subr.mxu0 0.0
      %1225 = vmatpush1.msra.mxu0 0.0
      %1226 = vmatprep.subr.mxu0 0.0
      %1227 = vmatpush1.msra.mxu0 0.0
      %1228 = vmatprep.subr.mxu0 0.0
      %1229 = vmatpush1.msra.mxu0 0.0
      %1230 = vmatprep.mubr.f32.mxu0 0.0
      %1231 = vmatmul.mubr.f32.gmra.mrb[0].mxu0 %v1158
      %v1232 = vpop.f32.mrb[0].mxu0
      %v1233 = vadd.f32 0.0, %v1232
      %v1234 = vpop.f32.mrb[0].mxu0
      %v1235 = vadd.f32 0.0, %v1234
      %1236 = vdwg.mxu0
      %1237 = vmatprep.subr.mxu0 0.0
      %1238 = vmatpush1.msra.mxu0 %v1164
      %1239 = vmatprep.subr.mxu0 0.0
      %1240 = vmatpush1.msra.mxu0 0.0
      %1241 = vmatprep.subr.mxu0 0.0
      %1242 = vmatpush1.msra.mxu0 0.0
      %1243 = vmatprep.subr.mxu0 0.0
      %1244 = vmatpush1.msra.mxu0 0.0
      %1245 = vmatprep.subr.mxu0 0.0
      %1246 = vmatpush1.msra.mxu0 0.0
      %1247 = vmatprep.subr.mxu0 0.0
      %1248 = vmatpush1.msra.mxu0 0.0
      %1249 = vmatprep.subr.mxu0 0.0
      %1250 = vmatpush1.msra.mxu0 0.0
      %1251 = vmatprep.subr.mxu0 0.0
      %1252 = vmatpush1.msra.mxu0 0.0
      %1253 = vmatprep.subr.mxu0 0.0
      %1254 = vmatpush1.msra.mxu0 0.0
      %1255 = vmatprep.subr.mxu0 0.0
      %1256 = vmatpush1.msra.mxu0 0.0
      %1257 = vmatprep.subr.mxu0 0.0
      %1258 = vmatpush1.msra.mxu0 0.0
      %1259 = vmatprep.subr.mxu0 0.0
      %1260 = vmatpush1.msra.mxu0 0.0
      %1261 = vmatprep.subr.mxu0 0.0
      %1262 = vmatpush1.msra.mxu0 0.0
      %1263 = vmatprep.subr.mxu0 0.0
      %1264 = vmatpush1.msra.mxu0 0.0
      %1265 = vmatprep.subr.mxu0 0.0
      %1266 = vmatpush1.msra.mxu0 0.0
      %1267 = vmatprep.subr.mxu0 0.0
      %1268 = vmatpush1.msra.mxu0 0.0
      %1269 = vmatprep.subr.mxu0 0.0
      %1270 = vmatpush1.msra.mxu0 0.0
      %1271 = vmatprep.subr.mxu0 0.0
      %1272 = vmatpush1.msra.mxu0 0.0
      %1273 = vmatprep.subr.mxu0 0.0
      %1274 = vmatpush1.msra.mxu0 0.0
      %1275 = vmatprep.subr.mxu0 0.0
      %1276 = vmatpush1.msra.mxu0 0.0
      %1277 = vmatprep.subr.mxu0 0.0
      %1278 = vmatpush1.msra.mxu0 0.0
      %1279 = vmatprep.subr.mxu0 0.0
      %1280 = vmatpush1.msra.mxu0 0.0
      %1281 = vmatprep.subr.mxu0 0.0
      %1282 = vmatpush1.msra.mxu0 0.0
      %1283 = vmatprep.subr.mxu0 0.0
      %1284 = vmatpush1.msra.mxu0 0.0
      %1285 = vmatprep.subr.mxu0 0.0
      %1286 = vmatpush1.msra.mxu0 0.0
      %1287 = vmatprep.subr.mxu0 0.0
      %1288 = vmatpush1.msra.mxu0 0.0
      %1289 = vmatprep.subr.mxu0 0.0
      %1290 = vmatpush1.msra.mxu0 0.0
      %1291 = vmatprep.subr.mxu0 0.0
      %1292 = vmatpush1.msra.mxu0 0.0
      %1293 = vmatprep.subr.mxu0 0.0
      %1294 = vmatpush1.msra.mxu0 0.0
      %1295 = vmatprep.subr.mxu0 0.0
      %1296 = vmatpush1.msra.mxu0 0.0
      %1297 = vmatprep.subr.mxu0 0.0
      %1298 = vmatpush1.msra.mxu0 0.0
      %1299 = vmatprep.subr.mxu0 0.0
      %1300 = vmatpush1.msra.mxu0 0.0
      %1301 = vmatprep.mubr.f32.mxu0 0.0
      %1302 = vmatmul.mubr.f32.gmra.mrb[0].mxu0 %v1158
      %v1303 = vpop.f32.mrb[0].mxu0
      %v1304 = vadd.f32 0.0, %v1303
      %v1305 = vpop.f32.mrb[0].mxu0
      %1306 = vdwg.mxu0
      %v1307 = vadd.f32 %v1143, %v1233
      %v1308 = vadd.f32 %v1144, %v1235
      %v1309 = vadd.f32 %v1145, %v1304
      %s1310 = scalar_lea.vmem %s1, 56
      %v1311 = vld [vmem:[%s1310] sm:$0xff]
      %1312 = vrot.lane.b32.xlu0 %v171, 91
      %v1313 = vpop.permute.xlu0 %1312
      %1314 = vrot.lane.b32.xlu0 %v178, 91
      %v1315 = vpop.permute.xlu0 %1314
      %1316 = vrot.lane.b32.xlu0 %v172, 91
      %v1317 = vpop.permute.xlu0 %1316
      %vm1318 = vcmask 744448
      %v1319 = vsel %vm1318, %v1313, %v1315
      %v1320 = vsel %vm1318, %v1315, %v1317
      %v1322 = vsel %vm188, %v1311, 0
      %v1324 = vsel %vm192, %v1319, 0
      %v1326 = vsel %vm192, %v1320, 0
      %v1328 = vsel %vm192, %v1317, 0
      %1330 = vmatprep.subr.mxu0 %v1326
      %1331 = vmatpush1.msra.mxu0 %v1324
      %1332 = vmatprep.subr.mxu0 0.0
      %1333 = vmatpush1.msra.mxu0 0.0
      %1334 = vmatprep.subr.mxu0 0.0
      %1335 = vmatpush1.msra.mxu0 0.0
      %1336 = vmatprep.subr.mxu0 0.0
      %1337 = vmatpush1.msra.mxu0 0.0
      %1338 = vmatprep.subr.mxu0 0.0
      %1339 = vmatpush1.msra.mxu0 0.0
      %1340 = vmatprep.subr.mxu0 0.0
      %1341 = vmatpush1.msra.mxu0 0.0
      %1342 = vmatprep.subr.mxu0 0.0
      %1343 = vmatpush1.msra.mxu0 0.0
      %1344 = vmatprep.subr.mxu0 0.0
      %1345 = vmatpush1.msra.mxu0 0.0
      %1346 = vmatprep.subr.mxu0 0.0
      %1347 = vmatpush1.msra.mxu0 0.0
      %1348 = vmatprep.subr.mxu0 0.0
      %1349 = vmatpush1.msra.mxu0 0.0
      %1350 = vmatprep.subr.mxu0 0.0
      %1351 = vmatpush1.msra.mxu0 0.0
      %1352 = vmatprep.subr.mxu0 0.0
      %1353 = vmatpush1.msra.mxu0 0.0
      %1354 = vmatprep.subr.mxu0 0.0
      %1355 = vmatpush1.msra.mxu0 0.0
      %1356 = vmatprep.subr.mxu0 0.0
      %1357 = vmatpush1.msra.mxu0 0.0
      %1358 = vmatprep.subr.mxu0 0.0
      %1359 = vmatpush1.msra.mxu0 0.0
      %1360 = vmatprep.subr.mxu0 0.0
      %1361 = vmatpush1.msra.mxu0 0.0
      %1362 = vmatprep.subr.mxu0 0.0
      %1363 = vmatpush1.msra.mxu0 0.0
      %1364 = vmatprep.subr.mxu0 0.0
      %1365 = vmatpush1.msra.mxu0 0.0
      %1366 = vmatprep.subr.mxu0 0.0
      %1367 = vmatpush1.msra.mxu0 0.0
      %1368 = vmatprep.subr.mxu0 0.0
      %1369 = vmatpush1.msra.mxu0 0.0
      %1370 = vmatprep.subr.mxu0 0.0
      %1371 = vmatpush1.msra.mxu0 0.0
      %1372 = vmatprep.subr.mxu0 0.0
      %1373 = vmatpush1.msra.mxu0 0.0
      %1374 = vmatprep.subr.mxu0 0.0
      %1375 = vmatpush1.msra.mxu0 0.0
      %1376 = vmatprep.subr.mxu0 0.0
      %1377 = vmatpush1.msra.mxu0 0.0
      %1378 = vmatprep.subr.mxu0 0.0
      %1379 = vmatpush1.msra.mxu0 0.0
      %1380 = vmatprep.subr.mxu0 0.0
      %1381 = vmatpush1.msra.mxu0 0.0
      %1382 = vmatprep.subr.mxu0 0.0
      %1383 = vmatpush1.msra.mxu0 0.0
      %1384 = vmatprep.subr.mxu0 0.0
      %1385 = vmatpush1.msra.mxu0 0.0
      %1386 = vmatprep.subr.mxu0 0.0
      %1387 = vmatpush1.msra.mxu0 0.0
      %1388 = vmatprep.subr.mxu0 0.0
      %1389 = vmatpush1.msra.mxu0 0.0
      %1390 = vmatprep.subr.mxu0 0.0
      %1391 = vmatpush1.msra.mxu0 0.0
      %1392 = vmatprep.subr.mxu0 0.0
      %1393 = vmatpush1.msra.mxu0 0.0
      %1394 = vmatprep.mubr.f32.mxu0 0.0
      %1395 = vmatmul.mubr.f32.gmra.mrb[0].mxu0 %v1322
      %v1396 = vpop.f32.mrb[0].mxu0
      %v1397 = vadd.f32 0.0, %v1396
      %v1398 = vpop.f32.mrb[0].mxu0
      %v1399 = vadd.f32 0.0, %v1398
      %1400 = vdwg.mxu0
      %1401 = vmatprep.subr.mxu0 0.0
      %1402 = vmatpush1.msra.mxu0 %v1328
      %1403 = vmatprep.subr.mxu0 0.0
      %1404 = vmatpush1.msra.mxu0 0.0
      %1405 = vmatprep.subr.mxu0 0.0
      %1406 = vmatpush1.msra.mxu0 0.0
      %1407 = vmatprep.subr.mxu0 0.0
      %1408 = vmatpush1.msra.mxu0 0.0
      %1409 = vmatprep.subr.mxu0 0.0
      %1410 = vmatpush1.msra.mxu0 0.0
      %1411 = vmatprep.subr.mxu0 0.0
      %1412 = vmatpush1.msra.mxu0 0.0
      %1413 = vmatprep.subr.mxu0 0.0
      %1414 = vmatpush1.msra.mxu0 0.0
      %1415 = vmatprep.subr.mxu0 0.0
      %1416 = vmatpush1.msra.mxu0 0.0
      %1417 = vmatprep.subr.mxu0 0.0
      %1418 = vmatpush1.msra.mxu0 0.0
      %1419 = vmatprep.subr.mxu0 0.0
      %1420 = vmatpush1.msra.mxu0 0.0
      %1421 = vmatprep.subr.mxu0 0.0
      %1422 = vmatpush1.msra.mxu0 0.0
      %1423 = vmatprep.subr.mxu0 0.0
      %1424 = vmatpush1.msra.mxu0 0.0
      %1425 = vmatprep.subr.mxu0 0.0
      %1426 = vmatpush1.msra.mxu0 0.0
      %1427 = vmatprep.subr.mxu0 0.0
      %1428 = vmatpush1.msra.mxu0 0.0
      %1429 = vmatprep.subr.mxu0 0.0
      %1430 = vmatpush1.msra.mxu0 0.0
      %1431 = vmatprep.subr.mxu0 0.0
      %1432 = vmatpush1.msra.mxu0 0.0
      %1433 = vmatprep.subr.mxu0 0.0
      %1434 = vmatpush1.msra.mxu0 0.0
      %1435 = vmatprep.subr.mxu0 0.0
      %1436 = vmatpush1.msra.mxu0 0.0
      %1437 = vmatprep.subr.mxu0 0.0
      %1438 = vmatpush1.msra.mxu0 0.0
      %1439 = vmatprep.subr.mxu0 0.0
      %1440 = vmatpush1.msra.mxu0 0.0
      %1441 = vmatprep.subr.mxu0 0.0
      %1442 = vmatpush1.msra.mxu0 0.0
      %1443 = vmatprep.subr.mxu0 0.0
      %1444 = vmatpush1.msra.mxu0 0.0
      %1445 = vmatprep.subr.mxu0 0.0
      %1446 = vmatpush1.msra.mxu0 0.0
      %1447 = vmatprep.subr.mxu0 0.0
      %1448 = vmatpush1.msra.mxu0 0.0
      %1449 = vmatprep.subr.mxu0 0.0
      %1450 = vmatpush1.msra.mxu0 0.0
      %1451 = vmatprep.subr.mxu0 0.0
      %1452 = vmatpush1.msra.mxu0 0.0
      %1453 = vmatprep.subr.mxu0 0.0
      %1454 = vmatpush1.msra.mxu0 0.0
      %1455 = vmatprep.subr.mxu0 0.0
      %1456 = vmatpush1.msra.mxu0 0.0
      %1457 = vmatprep.subr.mxu0 0.0
      %1458 = vmatpush1.msra.mxu0 0.0
      %1459 = vmatprep.subr.mxu0 0.0
      %1460 = vmatpush1.msra.mxu0 0.0
      %1461 = vmatprep.subr.mxu0 0.0
      %1462 = vmatpush1.msra.mxu0 0.0
      %1463 = vmatprep.subr.mxu0 0.0
      %1464 = vmatpush1.msra.mxu0 0.0
      %1465 = vmatprep.mubr.f32.mxu0 0.0
      %1466 = vmatmul.mubr.f32.gmra.mrb[0].mxu0 %v1322
      %v1467 = vpop.f32.mrb[0].mxu0
      %v1468 = vadd.f32 0.0, %v1467
      %v1469 = vpop.f32.mrb[0].mxu0
      %1470 = vdwg.mxu0
      %v1471 = vadd.f32 %v1307, %v1397
      %v1472 = vadd.f32 %v1308, %v1399
      %v1473 = vadd.f32 %v1309, %v1468
      %s1474 = scalar_lea.vmem %s1, 64
      %v1475 = vld [vmem:[%s1474] sm:$0xff]
      %1476 = vrot.lane.b32.xlu0 %v171, 90
      %v1477 = vpop.permute.xlu0 %1476
      %1478 = vrot.lane.b32.xlu0 %v178, 90
      %v1479 = vpop.permute.xlu0 %1478
      %1480 = vrot.lane.b32.xlu0 %v172, 90
      %v1481 = vpop.permute.xlu0 %1480
      %vm1482 = vcmask 736256
      %v1483 = vsel %vm1482, %v1477, %v1479
      %v1484 = vsel %vm1482, %v1479, %v1481
      %v1486 = vsel %vm188, %v1475, 0
      %v1488 = vsel %vm192, %v1483, 0
      %v1490 = vsel %vm192, %v1484, 0
      %v1492 = vsel %vm192, %v1481, 0
      %1494 = vmatprep.subr.mxu0 %v1490
      %1495 = vmatpush1.msra.mxu0 %v1488
      %1496 = vmatprep.subr.mxu0 0.0
      %1497 = vmatpush1.msra.mxu0 0.0
      %1498 = vmatprep.subr.mxu0 0.0
      %1499 = vmatpush1.msra.mxu0 0.0
      %1500 = vmatprep.subr.mxu0 0.0
      %1501 = vmatpush1.msra.mxu0 0.0
      %1502 = vmatprep.subr.mxu0 0.0
      %1503 = vmatpush1.msra.mxu0 0.0
      %1504 = vmatprep.subr.mxu0 0.0
      %1505 = vmatpush1.msra.mxu0 0.0
      %1506 = vmatprep.subr.mxu0 0.0
      %1507 = vmatpush1.msra.mxu0 0.0
      %1508 = vmatprep.subr.mxu0 0.0
      %1509 = vmatpush1.msra.mxu0 0.0
      %1510 = vmatprep.subr.mxu0 0.0
      %1511 = vmatpush1.msra.mxu0 0.0
      %1512 = vmatprep.subr.mxu0 0.0
      %1513 = vmatpush1.msra.mxu0 0.0
      %1514 = vmatprep.subr.mxu0 0.0
      %1515 = vmatpush1.msra.mxu0 0.0
      %1516 = vmatprep.subr.mxu0 0.0
      %1517 = vmatpush1.msra.mxu0 0.0
      %1518 = vmatprep.subr.mxu0 0.0
      %1519 = vmatpush1.msra.mxu0 0.0
      %1520 = vmatprep.subr.mxu0 0.0
      %1521 = vmatpush1.msra.mxu0 0.0
      %1522 = vmatprep.subr.mxu0 0.0
      %1523 = vmatpush1.msra.mxu0 0.0
      %1524 = vmatprep.subr.mxu0 0.0
      %1525 = vmatpush1.msra.mxu0 0.0
      %1526 = vmatprep.subr.mxu0 0.0
      %1527 = vmatpush1.msra.mxu0 0.0
      %1528 = vmatprep.subr.mxu0 0.0
      %1529 = vmatpush1.msra.mxu0 0.0
      %1530 = vmatprep.subr.mxu0 0.0
      %1531 = vmatpush1.msra.mxu0 0.0
      %1532 = vmatprep.subr.mxu0 0.0
      %1533 = vmatpush1.msra.mxu0 0.0
      %1534 = vmatprep.subr.mxu0 0.0
      %1535 = vmatpush1.msra.mxu0 0.0
      %1536 = vmatprep.subr.mxu0 0.0
      %1537 = vmatpush1.msra.mxu0 0.0
      %1538 = vmatprep.subr.mxu0 0.0
      %1539 = vmatpush1.msra.mxu0 0.0
      %1540 = vmatprep.subr.mxu0 0.0
      %1541 = vmatpush1.msra.mxu0 0.0
      %1542 = vmatprep.subr.mxu0 0.0
      %1543 = vmatpush1.msra.mxu0 0.0
      %1544 = vmatprep.subr.mxu0 0.0
      %1545 = vmatpush1.msra.mxu0 0.0
      %1546 = vmatprep.subr.mxu0 0.0
      %1547 = vmatpush1.msra.mxu0 0.0
      %1548 = vmatprep.subr.mxu0 0.0
      %1549 = vmatpush1.msra.mxu0 0.0
      %1550 = vmatprep.subr.mxu0 0.0
      %1551 = vmatpush1.msra.mxu0 0.0
      %1552 = vmatprep.subr.mxu0 0.0
      %1553 = vmatpush1.msra.mxu0 0.0
      %1554 = vmatprep.subr.mxu0 0.0
      %1555 = vmatpush1.msra.mxu0 0.0
      %1556 = vmatprep.subr.mxu0 0.0
      %1557 = vmatpush1.msra.mxu0 0.0
      %1558 = vmatprep.mubr.f32.mxu0 0.0
      %1559 = vmatmul.mubr.f32.gmra.mrb[0].mxu0 %v1486
      %v1560 = vpop.f32.mrb[0].mxu0
      %v1561 = vadd.f32 0.0, %v1560
      %v1562 = vpop.f32.mrb[0].mxu0
      %v1563 = vadd.f32 0.0, %v1562
      %1564 = vdwg.mxu0
      %1565 = vmatprep.subr.mxu0 0.0
      %1566 = vmatpush1.msra.mxu0 %v1492
      %1567 = vmatprep.subr.mxu0 0.0
      %1568 = vmatpush1.msra.mxu0 0.0
      %1569 = vmatprep.subr.mxu0 0.0
      %1570 = vmatpush1.msra.mxu0 0.0
      %1571 = vmatprep.subr.mxu0 0.0
      %1572 = vmatpush1.msra.mxu0 0.0
      %1573 = vmatprep.subr.mxu0 0.0
      %1574 = vmatpush1.msra.mxu0 0.0
      %1575 = vmatprep.subr.mxu0 0.0
      %1576 = vmatpush1.msra.mxu0 0.0
      %1577 = vmatprep.subr.mxu0 0.0
      %1578 = vmatpush1.msra.mxu0 0.0
      %1579 = vmatprep.subr.mxu0 0.0
      %1580 = vmatpush1.msra.mxu0 0.0
      %1581 = vmatprep.subr.mxu0 0.0
      %1582 = vmatpush1.msra.mxu0 0.0
      %1583 = vmatprep.subr.mxu0 0.0
      %1584 = vmatpush1.msra.mxu0 0.0
      %1585 = vmatprep.subr.mxu0 0.0
      %1586 = vmatpush1.msra.mxu0 0.0
      %1587 = vmatprep.subr.mxu0 0.0
      %1588 = vmatpush1.msra.mxu0 0.0
      %1589 = vmatprep.subr.mxu0 0.0
      %1590 = vmatpush1.msra.mxu0 0.0
      %1591 = vmatprep.subr.mxu0 0.0
      %1592 = vmatpush1.msra.mxu0 0.0
      %1593 = vmatprep.subr.mxu0 0.0
      %1594 = vmatpush1.msra.mxu0 0.0
      %1595 = vmatprep.subr.mxu0 0.0
      %1596 = vmatpush1.msra.mxu0 0.0
      %1597 = vmatprep.subr.mxu0 0.0
      %1598 = vmatpush1.msra.mxu0 0.0
      %1599 = vmatprep.subr.mxu0 0.0
      %1600 = vmatpush1.msra.mxu0 0.0
      %1601 = vmatprep.subr.mxu0 0.0
      %1602 = vmatpush1.msra.mxu0 0.0
      %1603 = vmatprep.subr.mxu0 0.0
      %1604 = vmatpush1.msra.mxu0 0.0
      %1605 = vmatprep.subr.mxu0 0.0
      %1606 = vmatpush1.msra.mxu0 0.0
      %1607 = vmatprep.subr.mxu0 0.0
      %1608 = vmatpush1.msra.mxu0 0.0
      %1609 = vmatprep.subr.mxu0 0.0
      %1610 = vmatpush1.msra.mxu0 0.0
      %1611 = vmatprep.subr.mxu0 0.0
      %1612 = vmatpush1.msra.mxu0 0.0
      %1613 = vmatprep.subr.mxu0 0.0
      %1614 = vmatpush1.msra.mxu0 0.0
      %1615 = vmatprep.subr.mxu0 0.0
      %1616 = vmatpush1.msra.mxu0 0.0
      %1617 = vmatprep.subr.mxu0 0.0
      %1618 = vmatpush1.msra.mxu0 0.0
      %1619 = vmatprep.subr.mxu0 0.0
      %1620 = vmatpush1.msra.mxu0 0.0
      %1621 = vmatprep.subr.mxu0 0.0
      %1622 = vmatpush1.msra.mxu0 0.0
      %1623 = vmatprep.subr.mxu0 0.0
      %1624 = vmatpush1.msra.mxu0 0.0
      %1625 = vmatprep.subr.mxu0 0.0
      %1626 = vmatpush1.msra.mxu0 0.0
      %1627 = vmatprep.subr.mxu0 0.0
      %1628 = vmatpush1.msra.mxu0 0.0
      %1629 = vmatprep.mubr.f32.mxu0 0.0
      %1630 = vmatmul.mubr.f32.gmra.mrb[0].mxu0 %v1486
      %v1631 = vpop.f32.mrb[0].mxu0
      %v1632 = vadd.f32 0.0, %v1631
      %v1633 = vpop.f32.mrb[0].mxu0
      %1634 = vdwg.mxu0
      %v1635 = vadd.f32 %v1471, %v1561
      %v1636 = vadd.f32 %v1472, %v1563
      %v1637 = vadd.f32 %v1473, %v1632
      %v1638 = vld [vmem:[%s2] sm:$0xff]
      %1640 = vset.pattern.permute.xlu0 0
      %1641 = vperm.xlu0 %1640, %v1638
      %v1642 = vpop.permute.xlu0 %1641
      %v1644 = vadd.f32 %v1635, %v1642
      %v1645 = vadd.f32 %v1636, %v1642
      %v1646 = vadd.f32 %v1637, %v1642
      %v1647 = vmax.f32 %v1644, 0.0
      %v1648 = vmax.f32 %v1645, 0.0
      %v1649 = vmax.f32 %v1646, 0.0
      %1650 = vst [vmem:[%s170] sm:$0xff] %v1647
      %1651 = vst [vmem:[%s170 + $0x8] sm:$0xff] %v1648
      %vm1652 = vcmask 261120
      %1653 = vst.msk [vmem:[%s170 + $0x10] sm:$0xff] %vm1652, %v1649
      %p1654 = scmp.lt.s32.totalorder %s14, 1
      %s1655 = scalar_select %p1654, %s14, 1
      %s1656 = smul.addr %s1655, 3
      %s1657 = smul.addr %s1656, 8
      %s1658 = scalar_lea.vmem %s3, %s1657
      // Predicated region
      $region33: #{basic_conv.1} parent=31 // pred_check
        %p1659 = pneg %p100
      $region34: #{basic_conv.1} parent=31 // pred_check_branch
        %1661 = sbr.rel (%p1659) target = $region36
      $region35: #{basic_conv.1} parent=31 // pred_region
        _
      $region36: #{basic_conv.1} parent=31 // pred_fallthru
        _
    $region32: #{basic_conv.1} parent=5 // pred_fallthru
      _
    %p1662 = scmp.le.s32.totalorder 2, %s9
    // Predicated region
    $region37: #{basic_conv.1} parent=5 // pred_check
      %p1663 = pneg %p1662
    $region38: #{basic_conv.1} parent=5 // pred_check_branch
      %1665 = sbr.rel (%p1663) target = $region40
    $region39: #{basic_conv.1} parent=5 // pred_region
      %s1666 = ssub.s32 %s9, 2
      // Predicated region
      $region41: #{basic_conv.1} parent=39 // pred_check
        %p1667 = pneg %p106
      $region42: #{basic_conv.1} parent=39 // pred_check_branch
        %1669 = sbr.rel (%p1667) target = $region44
      $region43: #{basic_conv.1} parent=39 // pred_region
        %p1670 = scmp.lt.s32.totalorder %s15, 1
        %s1671 = scalar_select %p1670, %s15, 1
        %s1672 = smul.addr %s1671, 3
        %s1673 = smul.addr %s1672, 8
        %s1674 = scalar_lea.vmem %s3, %s1673
      $region44: #{basic_conv.1} parent=39 // pred_fallthru
        _
    $region40: #{basic_conv.1} parent=5 // pred_fallthru
      _
  $region6: #{basic_conv.1} parent=0 // loop_footer
    %s13 = sadd.s32 1, %s9
  $region7: #{basic_conv.1} parent=0 // loop_footer_branch
    %8 = sbr.rel target = $region3
  $region8: #{basic_conv.1} parent=0 // loop_exit
    _

</llo_original>
